<compile_context>
chip_gen: v7x
topology: tpu7x:2x2x1
jax: 0.10.0
libtpu: 0.0.40
codegen_flags: <defaults>
</compile_context>

<pallas_src>
import math
import functools

import jax
import jax.numpy as jnp
from jax import lax
from jax.experimental import pallas as pl
from jax.experimental.pallas import tpu as pltpu


def _multihead_kernel(q_ref, k_ref, v_ref, wq_ref, wk_ref, wv_ref, o_ref,
                      kp_ref, vp_ref, acc_ref,
                      *, n_heads, inv_scale, compute_dtype, approx_recip):
    cd = compute_dtype

    # ---- per-batch work: K/V projections, run only at q-tile 0 -------------
    # Full-width (Sk, D) @ (D, D) MXU matmuls; results live in VMEM scratch for
    # the remaining nq-1 q-tiles of this batch element (no recompute).
    @pl.when(pl.program_id(1) == 0)
    def _():
        k = k_ref[0].astype(cd)                                      # (Sk, Dk)
        v = v_ref[0].astype(cd)                                      # (Sk, Dv)
        kp_ref[...] = jnp.dot(k, wk_ref[...],
                              preferred_element_type=jnp.float32).astype(cd)
        vp_ref[...] = jnp.dot(v, wv_ref[...],
                              preferred_element_type=jnp.float32).astype(cd)

    # ---- per-q-tile work ----------------------------------------------------
    q = q_ref[0].astype(cd)                                          # (tq, Dk)
    qp = jnp.dot(q, wq_ref[...], preferred_element_type=jnp.float32)
    qp = (qp * inv_scale).astype(cd)      # scale the small side, not (tq, Sk)

    kp = kp_ref[...]                                                 # (Sk, Dk)
    vp = vp_ref[...]                                                 # (Sk, Dv)

    dh_k = qp.shape[-1] // n_heads
    dh_v = vp.shape[-1] // n_heads

    # Static, unrolled head loop.  Each head's result goes straight into the
    # f32 VMEM scratch at a static column offset, so nothing stays live across
    # heads (no vreg-pressure from an `outs` list, no concatenate relayout).
    for h in range(n_heads):
        qh = qp[:, h * dh_k:(h + 1) * dh_k]                          # (tq, dh_k)
        kh = kp[:, h * dh_k:(h + 1) * dh_k]                          # (Sk, dh_k)
        vh = vp[:, h * dh_v:(h + 1) * dh_v]                          # (Sk, dh_v)

        # q @ k^T without an in-kernel transpose: contract the last dims.
        scores = lax.dot_general(qh, kh, (((1,), (1,)), ((), ())),
                                 preferred_element_type=jnp.float32)  # (tq, Sk)
        # TODO(synk): causal triu / `padding` masks would be applied to `scores`
        #             here (module defaults: causal=False, padding=None).
        scores = scores - jnp.max(scores, axis=-1, keepdims=True)
        e = jnp.exp(scores)
        p = e * pl.reciprocal(jnp.sum(e, axis=-1, keepdims=True),
                              approx=approx_recip)
        # TODO(synk): dropout on `p` is identity (inference / eval mode).
        acc_ref[:, h * dh_v:(h + 1) * dh_v] = jnp.dot(
            p.astype(cd), vh, preferred_element_type=jnp.float32)     # (tq, dh_v)

    # Single cast + single (tq, Dv) store  ==  torch.cat of head outputs.
    o_ref[0] = acc_ref[...].astype(o_ref.dtype)


def multihead_forward(query, key, value, wq, wk, wv, n_heads,
                      compute_dtype=jnp.bfloat16, max_tq=512):
    """query (B,Sq,Dk), key (B,Sk,Dk), value (B,Sk,Dv); wq/wk (Dk,Dk), wv (Dv,Dv)
    in PyTorch Linear layout (out, in).  Returns (B, Sq, Dv)."""
    B, Sq, Dk = query.shape
    _, Sk, _ = key.shape
    Dv = value.shape[-1]
    assert Dk % n_heads == 0 and Dv % n_heads == 0

    # Pre-transpose + pre-cast the (out, in) weights ONCE in the wrapper:
    # x @ wq_t == x @ Wq^T, and the kernel never pays a per-step weight cast.
    wq_t = wq.T.astype(compute_dtype)
    wk_t = wk.T.astype(compute_dtype)
    wv_t = wv.T.astype(compute_dtype)

    inv_scale = 1.0 / math.sqrt(Dk)   # full d_key, matching Attention(d_key, ...)

    # Tile queries; K/V and weights are resident across the whole q axis.
    tq = Sq if Sq <= max_tq else max_tq
    nq = pl.cdiv(Sq, tq)

    kernel = functools.partial(
        _multihead_kernel,
        n_heads=n_heads,
        inv_scale=inv_scale,
        compute_dtype=compute_dtype,
        approx_recip=(compute_dtype != jnp.float32),  # exact recip on f32 path
    )

    in_size = jnp.dtype(query.dtype).itemsize
    cd_size = jnp.dtype(compute_dtype).itemsize

    # Rough resident-VMEM estimate (double-buffered blocks + scratch + score
    # temporaries headroom), clamped to a sane range.
    # TODO(synk): on v7x (64 MiB physical VMEM) tile Sk (flash) for long
    #             sequences rather than relying on a raised limit.
    vmem_est = (2 * tq * Dk * in_size                      # q blocks
                + 2 * Sk * (Dk + Dv) * in_size             # k / v blocks
                + 2 * (2 * Dk * Dk + Dv * Dv) * cd_size    # weight blocks
                + 2 * tq * Dv * in_size                    # output blocks
                + Sk * (Dk + Dv) * cd_size                 # kp / vp scratch
                + tq * Dv * 4                              # acc scratch
                + 4 * tq * Sk * 4)                         # score temporaries
    vmem_limit = int(max(32 * 1024 * 1024,
                         min(96 * 1024 * 1024, 2 * vmem_est)))

    # K/V projections now run once per batch (not once per q-tile).
    flops = 2 * B * (Sq * Dk * Dk                       # q projection
                     + Sk * Dk * Dk + Sk * Dv * Dv      # k / v projections
                     + Sq * Sk * Dk + Sq * Sk * Dv)     # attention matmuls
    bytes_accessed = int(
        in_size * (B * Sq * Dk + B * Sk * Dk + B * Sk * Dv + B * Sq * Dv)
        + cd_size * (2 * Dk * Dk + Dv * Dv))

    out = pl.pallas_call(
        kernel,
        out_shape=jax.ShapeDtypeStruct((B, Sq, Dv), query.dtype),
        grid_spec=pltpu.PrefetchScalarGridSpec(
            num_scalar_prefetch=0,
            grid=(B, nq),
            in_specs=[
                pl.BlockSpec((1, tq, Dk), lambda b, i: (b, i, 0)),
                # K/V/weight block indices never change along the q axis, so
                # their DMAs re-issue only at batch boundaries (weights: never).
                # TODO(synk): pipeline_mode=pl.Buffered(1) on these would halve
                #             their resident VMEM for v7x headroom.
                pl.BlockSpec((1, Sk, Dk), lambda b, i: (b, 0, 0)),
                pl.BlockSpec((1, Sk, Dv), lambda b, i: (b, 0, 0)),
                pl.BlockSpec((Dk, Dk), lambda b, i: (0, 0)),
                pl.BlockSpec((Dk, Dk), lambda b, i: (0, 0)),
                pl.BlockSpec((Dv, Dv), lambda b, i: (0, 0)),
            ],
            out_specs=pl.BlockSpec((1, tq, Dv), lambda b, i: (b, i, 0)),
            scratch_shapes=[
                pltpu.VMEM((Sk, Dk), compute_dtype),   # projected K (per batch)
                pltpu.VMEM((Sk, Dv), compute_dtype),   # projected V (per batch)
                pltpu.VMEM((tq, Dv), jnp.float32),     # per-tile head-concat acc
            ],
        ),
        compiler_params=pltpu.CompilerParams(
            # q axis carries the per-batch K/V scratch -> "arbitrary";
            # batch stays "parallel" so megacore (v7x: 2 TCs) shards across B.
            # TODO(synk): if B == 1 in production, split the q axis across
            #             cores instead of leaving one TC idle.
            dimension_semantics=("parallel", "arbitrary"),
            vmem_limit_bytes=vmem_limit),
        cost_estimate=pl.CostEstimate(
            flops=int(flops),
            transcendentals=int(B * n_heads * Sq * Sk),
            bytes_accessed=bytes_accessed),
    )(query, key, value, wq_t, wk_t, wv_t)
    return out


def _reference(query, key, value, wq, wk, wv, n_heads):
    """Pure-JAX reproduction of the PyTorch forward (eval mode, f32)."""
    Dk = query.shape[-1]
    q = query @ wq.T
    k = key @ wk.T
    v = value @ wv.T
    qs = jnp.split(q, n_heads, axis=-1)
    ks = jnp.split(k, n_heads, axis=-1)
    vs = jnp.split(v, n_heads, axis=-1)
    outs = []
    scale = math.sqrt(Dk)
    for qh, kh, vh in zip(qs, ks, vs):
        dots = jnp.einsum("bqd,bkd->bqk", qh, kh)
        p = jax.nn.softmax(dots / scale, axis=-1)
        outs.append(jnp.einsum("bqk,bkd->bqd", p, vh))
    return jnp.concatenate(outs, axis=-1)


if __name__ == "__main__":
    B, Sq, Sk = 2, 8, 8
    d_key, d_value, n_heads = 32, 32, 4

    key0 = jax.random.PRNGKey(0)
    kq, kk, kv, kwq, kwk, kwv = jax.random.split(key0, 6)

    query = jax.random.normal(kq, (B, Sq, d_key), dtype=jnp.float32)
    key_ = jax.random.normal(kk, (B, Sk, d_key), dtype=jnp.float32)
    value = jax.random.normal(kv, (B, Sk, d_value), dtype=jnp.float32)

    # Deterministic parameter init (nn.Linear-like uniform bound 1/sqrt(fan_in)).
    bound_k = 1.0 / math.sqrt(d_key)
    bound_v = 1.0 / math.sqrt(d_value)
    wq = jax.random.uniform(kwq, (d_key, d_key), jnp.float32, -bound_k, bound_k)
    wk = jax.random.uniform(kwk, (d_key, d_key), jnp.float32, -bound_k, bound_k)
    wv = jax.random.uniform(kwv, (d_value, d_value), jnp.float32, -bound_v, bound_v)

    ref = _reference(query, key_, value, wq, wk, wv, n_heads)

    # 1) f32-operand path: tight correctness check against the pure-JAX reference.
    out_f32 = multihead_forward(query, key_, value, wq, wk, wv, n_heads,
                                compute_dtype=jnp.float32)
    out_f32 = jax.block_until_ready(out_f32)
    assert out_f32.shape == (B, Sq, d_value)
    assert jnp.allclose(out_f32, ref, atol=1e-4, rtol=1e-4), "f32 mismatch vs reference"

    # 2) bf16-operand path (production default: bf16 MXU inputs, f32 accumulation).
    out_bf16 = multihead_forward(query, key_, value, wq, wk, wv, n_heads,
                                 compute_dtype=jnp.bfloat16)
    out_bf16 = jax.block_until_ready(out_bf16)
    assert out_bf16.shape == (B, Sq, d_value)
    assert jnp.allclose(out_bf16, ref, atol=5e-2, rtol=5e-2), "bf16 mismatch vs reference"

    # 3) Multi-q-tile path: exercises the per-batch K/V hoist being reused
    #    across nq > 1 q-tiles (tq forced small via max_tq).
    Sq2 = 16
    kq2 = jax.random.split(key0, 7)[-1]
    query2 = jax.random.normal(kq2, (B, Sq2, d_key), dtype=jnp.float32)
    ref2 = _reference(query2, key_, value, wq, wk, wv, n_heads)
    out2 = multihead_forward(query2, key_, value, wq, wk, wv, n_heads,
                             compute_dtype=jnp.float32, max_tq=8)
    out2 = jax.block_until_ready(out2)
    assert out2.shape == (B, Sq2, d_value)
    assert jnp.allclose(out2, ref2, atol=1e-4, rtol=1e-4), "tiled-q mismatch vs reference"

    print("KERNEL_OK")
</pallas_src>

<mosaic_0001>
module attributes {stable_mosaic.version = 11 : i64} {
  func.func @_multihead_kernel(%arg0: i32, %arg1: i32, %arg2: memref<1x8x32xf32, #tpu.memory_space<vmem>>, %arg3: memref<1x8x32xf32, #tpu.memory_space<vmem>>, %arg4: memref<1x8x32xf32, #tpu.memory_space<vmem>>, %arg5: memref<32x32xf32, #tpu.memory_space<vmem>>, %arg6: memref<32x32xf32, #tpu.memory_space<vmem>>, %arg7: memref<32x32xf32, #tpu.memory_space<vmem>>, %arg8: memref<1x8x32xf32, #tpu.memory_space<vmem>>, %arg9: memref<8x32xf32, #tpu.memory_space<vmem>>, %arg10: memref<8x32xf32, #tpu.memory_space<vmem>>, %arg11: memref<8x32xf32, #tpu.memory_space<vmem>>) attributes {dimension_semantics = [#tpu.dimension_semantics<parallel>, #tpu.dimension_semantics<arbitrary>], iteration_bounds = array<i64: 2, 1>, scalar_prefetch = 0 : i64, scratch_operands = 3 : i64, tpu.core_type = #tpu.core_type<tc>, window_params = [{transform_indices = @transform_0, window_bounds = array<i64: 1, 8, 32>}, {transform_indices = @transform_1, window_bounds = array<i64: 1, 8, 32>}, {transform_indices = @transform_2, window_bounds = array<i64: 1, 8, 32>}, {pipeline_mode = #tpu.pipeline_mode<synchronous>, transform_indices = @transform_3, window_bounds = array<i64: 32, 32>}, {pipeline_mode = #tpu.pipeline_mode<synchronous>, transform_indices = @transform_4, window_bounds = array<i64: 32, 32>}, {pipeline_mode = #tpu.pipeline_mode<synchronous>, transform_indices = @transform_5, window_bounds = array<i64: 32, 32>}, {transform_indices = @transform_6, window_bounds = array<i64: 1, 8, 32>}]} {
    %c0_i32 = arith.constant 0 : i32
    %0 = arith.cmpi eq, %arg1, %c0_i32 : i32
    %1 = arith.extui %0 : i1 to i32
    %c0_i32_0 = arith.constant 0 : i32
    %2 = arith.cmpi ne, %1, %c0_i32_0 : i32
    scf.if %2 {
      %c0_36 = arith.constant 0 : index
      %c0_37 = arith.constant 0 : index
      %c0_38 = arith.constant 0 : index
      %79 = vector.load %arg3[%c0_36, %c0_37, %c0_38] : memref<1x8x32xf32, #tpu.memory_space<vmem>>, vector<1x8x32xf32>
      %80 = vector.shape_cast %79 : vector<1x8x32xf32> to vector<8x32xf32>
      %c0_39 = arith.constant 0 : index
      %c0_40 = arith.constant 0 : index
      %c0_41 = arith.constant 0 : index
      %81 = vector.load %arg4[%c0_39, %c0_40, %c0_41] : memref<1x8x32xf32, #tpu.memory_space<vmem>>, vector<1x8x32xf32>
      %82 = vector.shape_cast %81 : vector<1x8x32xf32> to vector<8x32xf32>
      %c0_42 = arith.constant 0 : index
      %c0_43 = arith.constant 0 : index
      %83 = vector.load %arg6[%c0_42, %c0_43] : memref<32x32xf32, #tpu.memory_space<vmem>>, vector<32x32xf32>
      %cst_44 = arith.constant dense<0.000000e+00> : vector<8x32xf32>
      %84 = tpu.matmul %80, %83, %cst_44 {dimension_numbers = #tpu.dot_dimension_numbers<[1], [0], [0], [1], [0, 0, 1, 1], [], []>} : vector<8x32xf32>, vector<32x32xf32>, vector<8x32xf32> -> vector<8x32xf32>
      %c0_45 = arith.constant 0 : index
      %c0_46 = arith.constant 0 : index
      %85 = vector.load %arg9[%c0_45, %c0_46] : memref<8x32xf32, #tpu.memory_space<vmem>>, vector<8x32xf32>
      tpu.vector_store %arg9[%c0_45, %c0_46], %84 {strides = array<i32>} : memref<8x32xf32, #tpu.memory_space<vmem>>, vector<8x32xf32>,
      %c0_47 = arith.constant 0 : index
      %c0_48 = arith.constant 0 : index
      %86 = vector.load %arg7[%c0_47, %c0_48] : memref<32x32xf32, #tpu.memory_space<vmem>>, vector<32x32xf32>
      %cst_49 = arith.constant dense<0.000000e+00> : vector<8x32xf32>
      %87 = tpu.matmul %82, %86, %cst_49 {dimension_numbers = #tpu.dot_dimension_numbers<[1], [0], [0], [1], [0, 0, 1, 1], [], []>} : vector<8x32xf32>, vector<32x32xf32>, vector<8x32xf32> -> vector<8x32xf32>
      %c0_50 = arith.constant 0 : index
      %c0_51 = arith.constant 0 : index
      %88 = vector.load %arg10[%c0_50, %c0_51] : memref<8x32xf32, #tpu.memory_space<vmem>>, vector<8x32xf32>
      tpu.vector_store %arg10[%c0_50, %c0_51], %87 {strides = array<i32>} : memref<8x32xf32, #tpu.memory_space<vmem>>, vector<8x32xf32>,
    } else {
    }
    %c0 = arith.constant 0 : index
    %c0_1 = arith.constant 0 : index
    %c0_2 = arith.constant 0 : index
    %3 = vector.load %arg2[%c0, %c0_1, %c0_2] : memref<1x8x32xf32, #tpu.memory_space<vmem>>, vector<1x8x32xf32>
    %4 = vector.shape_cast %3 : vector<1x8x32xf32> to vector<8x32xf32>
    %c0_3 = arith.constant 0 : index
    %c0_4 = arith.constant 0 : index
    %5 = vector.load %arg5[%c0_3, %c0_4] : memref<32x32xf32, #tpu.memory_space<vmem>>, vector<32x32xf32>
    %cst = arith.constant dense<0.000000e+00> : vector<8x32xf32>
    %6 = tpu.matmul %4, %5, %cst {dimension_numbers = #tpu.dot_dimension_numbers<[1], [0], [0], [1], [0, 0, 1, 1], [], []>} : vector<8x32xf32>, vector<32x32xf32>, vector<8x32xf32> -> vector<8x32xf32>
    %cst_5 = arith.constant 0.176776692 : f32
    %7 = vector.broadcast %cst_5 : f32 to vector<8x32xf32>
    %8 = arith.mulf %6, %7 : vector<8x32xf32>
    %c0_6 = arith.constant 0 : index
    %c0_7 = arith.constant 0 : index
    %9 = vector.load %arg9[%c0_6, %c0_7] : memref<8x32xf32, #tpu.memory_space<vmem>>, vector<8x32xf32>
    %c0_8 = arith.constant 0 : index
    %c0_9 = arith.constant 0 : index
    %10 = vector.load %arg10[%c0_8, %c0_9] : memref<8x32xf32, #tpu.memory_space<vmem>>, vector<8x32xf32>
    %11 = vector.extract_strided_slice %8 {offsets = [0, 0], sizes = [8, 8], strides = [1, 1]} : vector<8x32xf32> to vector<8x8xf32>
    %12 = vector.extract_strided_slice %9 {offsets = [0, 0], sizes = [8, 8], strides = [1, 1]} : vector<8x32xf32> to vector<8x8xf32>
    %13 = vector.extract_strided_slice %10 {offsets = [0, 0], sizes = [8, 8], strides = [1, 1]} : vector<8x32xf32> to vector<8x8xf32>
    %cst_10 = arith.constant dense<0.000000e+00> : vector<8x8xf32>
    %14 = tpu.matmul %11, %12, %cst_10 {dimension_numbers = #tpu.dot_dimension_numbers<[1], [1], [0], [0], [0, 0, 1, 0], [], []>} : vector<8x8xf32>, vector<8x8xf32>, vector<8x8xf32> -> vector<8x8xf32>
    %cst_11 = arith.constant dense<0xFF800000> : vector<8xf32>
    %15 = vector.multi_reduction <maximumf>, %14, %cst_11 [1] : vector<8x8xf32> to vector<8xf32>
    %16 = vector.shape_cast %15 : vector<8xf32> to vector<8x1xf32>
    %17 = vector.broadcast %16 : vector<8x1xf32> to vector<8x8xf32>
    %18 = arith.subf %14, %17 : vector<8x8xf32>
    %19 = math.exp %18 : vector<8x8xf32>
    %cst_12 = arith.constant dense<0.000000e+00> : vector<8xf32>
    %20 = vector.multi_reduction <add>, %19, %cst_12 [1] : vector<8x8xf32> to vector<8xf32>
    %21 = vector.shape_cast %20 : vector<8xf32> to vector<8x1xf32>
    %22 = tpu.reciprocal %21 : vector<8x1xf32> -> vector<8x1xf32>
    %23 = vector.broadcast %22 : vector<8x1xf32> to vector<8x8xf32>
    %24 = arith.mulf %19, %23 : vector<8x8xf32>
    %cst_13 = arith.constant dense<0.000000e+00> : vector<8x8xf32>
    %25 = tpu.matmul %24, %13, %cst_13 {dimension_numbers = #tpu.dot_dimension_numbers<[1], [0], [0], [1], [0, 0, 1, 1], [], []>} : vector<8x8xf32>, vector<8x8xf32>, vector<8x8xf32> -> vector<8x8xf32>
    %c0_14 = arith.constant 0 : index
    %c0_15 = arith.constant 0 : index
    %26 = vector.load %arg11[%c0_14, %c0_15] : memref<8x32xf32, #tpu.memory_space<vmem>>, vector<8x8xf32>
    tpu.vector_store %arg11[%c0_14, %c0_15], %25 {strides = array<i32>} : memref<8x32xf32, #tpu.memory_space<vmem>>, vector<8x8xf32>,
    %27 = vector.extract_strided_slice %8 {offsets = [0, 8], sizes = [8, 8], strides = [1, 1]} : vector<8x32xf32> to vector<8x8xf32>
    %28 = vector.extract_strided_slice %9 {offsets = [0, 8], sizes = [8, 8], strides = [1, 1]} : vector<8x32xf32> to vector<8x8xf32>
    %29 = vector.extract_strided_slice %10 {offsets = [0, 8], sizes = [8, 8], strides = [1, 1]} : vector<8x32xf32> to vector<8x8xf32>
    %cst_16 = arith.constant dense<0.000000e+00> : vector<8x8xf32>
    %30 = tpu.matmul %27, %28, %cst_16 {dimension_numbers = #tpu.dot_dimension_numbers<[1], [1], [0], [0], [0, 0, 1, 0], [], []>} : vector<8x8xf32>, vector<8x8xf32>, vector<8x8xf32> -> vector<8x8xf32>
    %cst_17 = arith.constant dense<0xFF800000> : vector<8xf32>
    %31 = vector.multi_reduction <maximumf>, %30, %cst_17 [1] : vector<8x8xf32> to vector<8xf32>
    %32 = vector.shape_cast %31 : vector<8xf32> to vector<8x1xf32>
    %33 = vector.broadcast %32 : vector<8x1xf32> to vector<8x8xf32>
    %34 = arith.subf %30, %33 : vector<8x8xf32>
    %35 = math.exp %34 : vector<8x8xf32>
    %cst_18 = arith.constant dense<0.000000e+00> : vector<8xf32>
    %36 = vector.multi_reduction <add>, %35, %cst_18 [1] : vector<8x8xf32> to vector<8xf32>
    %37 = vector.shape_cast %36 : vector<8xf32> to vector<8x1xf32>
    %38 = tpu.reciprocal %37 : vector<8x1xf32> -> vector<8x1xf32>
    %39 = vector.broadcast %38 : vector<8x1xf32> to vector<8x8xf32>
    %40 = arith.mulf %35, %39 : vector<8x8xf32>
    %cst_19 = arith.constant dense<0.000000e+00> : vector<8x8xf32>
    %41 = tpu.matmul %40, %29, %cst_19 {dimension_numbers = #tpu.dot_dimension_numbers<[1], [0], [0], [1], [0, 0, 1, 1], [], []>} : vector<8x8xf32>, vector<8x8xf32>, vector<8x8xf32> -> vector<8x8xf32>
    %c0_20 = arith.constant 0 : index
    %c8 = arith.constant 8 : index
    %42 = vector.load %arg11[%c0_20, %c8] : memref<8x32xf32, #tpu.memory_space<vmem>>, vector<8x8xf32>
    tpu.vector_store %arg11[%c0_20, %c8], %41 {strides = array<i32>} : memref<8x32xf32, #tpu.memory_space<vmem>>, vector<8x8xf32>,
    %43 = vector.extract_strided_slice %8 {offsets = [0, 16], sizes = [8, 8], strides = [1, 1]} : vector<8x32xf32> to vector<8x8xf32>
    %44 = vector.extract_strided_slice %9 {offsets = [0, 16], sizes = [8, 8], strides = [1, 1]} : vector<8x32xf32> to vector<8x8xf32>
    %45 = vector.extract_strided_slice %10 {offsets = [0, 16], sizes = [8, 8], strides = [1, 1]} : vector<8x32xf32> to vector<8x8xf32>
    %cst_21 = arith.constant dense<0.000000e+00> : vector<8x8xf32>
    %46 = tpu.matmul %43, %44, %cst_21 {dimension_numbers = #tpu.dot_dimension_numbers<[1], [1], [0], [0], [0, 0, 1, 0], [], []>} : vector<8x8xf32>, vector<8x8xf32>, vector<8x8xf32> -> vector<8x8xf32>
    %cst_22 = arith.constant dense<0xFF800000> : vector<8xf32>
    %47 = vector.multi_reduction <maximumf>, %46, %cst_22 [1] : vector<8x8xf32> to vector<8xf32>
    %48 = vector.shape_cast %47 : vector<8xf32> to vector<8x1xf32>
    %49 = vector.broadcast %48 : vector<8x1xf32> to vector<8x8xf32>
    %50 = arith.subf %46, %49 : vector<8x8xf32>
    %51 = math.exp %50 : vector<8x8xf32>
    %cst_23 = arith.constant dense<0.000000e+00> : vector<8xf32>
    %52 = vector.multi_reduction <add>, %51, %cst_23 [1] : vector<8x8xf32> to vector<8xf32>
    %53 = vector.shape_cast %52 : vector<8xf32> to vector<8x1xf32>
    %54 = tpu.reciprocal %53 : vector<8x1xf32> -> vector<8x1xf32>
    %55 = vector.broadcast %54 : vector<8x1xf32> to vector<8x8xf32>
    %56 = arith.mulf %51, %55 : vector<8x8xf32>
    %cst_24 = arith.constant dense<0.000000e+00> : vector<8x8xf32>
    %57 = tpu.matmul %56, %45, %cst_24 {dimension_numbers = #tpu.dot_dimension_numbers<[1], [0], [0], [1], [0, 0, 1, 1], [], []>} : vector<8x8xf32>, vector<8x8xf32>, vector<8x8xf32> -> vector<8x8xf32>
    %c0_25 = arith.constant 0 : index
    %c16 = arith.constant 16 : index
    %58 = vector.load %arg11[%c0_25, %c16] : memref<8x32xf32, #tpu.memory_space<vmem>>, vector<8x8xf32>
    tpu.vector_store %arg11[%c0_25, %c16], %57 {strides = array<i32>} : memref<8x32xf32, #tpu.memory_space<vmem>>, vector<8x8xf32>,
    %59 = vector.extract_strided_slice %8 {offsets = [0, 24], sizes = [8, 8], strides = [1, 1]} : vector<8x32xf32> to vector<8x8xf32>
    %60 = vector.extract_strided_slice %9 {offsets = [0, 24], sizes = [8, 8], strides = [1, 1]} : vector<8x32xf32> to vector<8x8xf32>
    %61 = vector.extract_strided_slice %10 {offsets = [0, 24], sizes = [8, 8], strides = [1, 1]} : vector<8x32xf32> to vector<8x8xf32>
    %cst_26 = arith.constant dense<0.000000e+00> : vector<8x8xf32>
    %62 = tpu.matmul %59, %60, %cst_26 {dimension_numbers = #tpu.dot_dimension_numbers<[1], [1], [0], [0], [0, 0, 1, 0], [], []>} : vector<8x8xf32>, vector<8x8xf32>, vector<8x8xf32> -> vector<8x8xf32>
    %cst_27 = arith.constant dense<0xFF800000> : vector<8xf32>
    %63 = vector.multi_reduction <maximumf>, %62, %cst_27 [1] : vector<8x8xf32> to vector<8xf32>
    %64 = vector.shape_cast %63 : vector<8xf32> to vector<8x1xf32>
    %65 = vector.broadcast %64 : vector<8x1xf32> to vector<8x8xf32>
    %66 = arith.subf %62, %65 : vector<8x8xf32>
    %67 = math.exp %66 : vector<8x8xf32>
    %cst_28 = arith.constant dense<0.000000e+00> : vector<8xf32>
    %68 = vector.multi_reduction <add>, %67, %cst_28 [1] : vector<8x8xf32> to vector<8xf32>
    %69 = vector.shape_cast %68 : vector<8xf32> to vector<8x1xf32>
    %70 = tpu.reciprocal %69 : vector<8x1xf32> -> vector<8x1xf32>
    %71 = vector.broadcast %70 : vector<8x1xf32> to vector<8x8xf32>
    %72 = arith.mulf %67, %71 : vector<8x8xf32>
    %cst_29 = arith.constant dense<0.000000e+00> : vector<8x8xf32>
    %73 = tpu.matmul %72, %61, %cst_29 {dimension_numbers = #tpu.dot_dimension_numbers<[1], [0], [0], [1], [0, 0, 1, 1], [], []>} : vector<8x8xf32>, vector<8x8xf32>, vector<8x8xf32> -> vector<8x8xf32>
    %c0_30 = arith.constant 0 : index
    %c24 = arith.constant 24 : index
    %74 = vector.load %arg11[%c0_30, %c24] : memref<8x32xf32, #tpu.memory_space<vmem>>, vector<8x8xf32>
    tpu.vector_store %arg11[%c0_30, %c24], %73 {strides = array<i32>} : memref<8x32xf32, #tpu.memory_space<vmem>>, vector<8x8xf32>,
    %c0_31 = arith.constant 0 : index
    %c0_32 = arith.constant 0 : index
    %75 = vector.load %arg11[%c0_31, %c0_32] : memref<8x32xf32, #tpu.memory_space<vmem>>, vector<8x32xf32>
    %c0_33 = arith.constant 0 : index
    %c0_34 = arith.constant 0 : index
    %c0_35 = arith.constant 0 : index
    %76 = vector.load %arg8[%c0_33, %c0_34, %c0_35] : memref<1x8x32xf32, #tpu.memory_space<vmem>>, vector<1x8x32xf32>
    %77 = vector.shape_cast %76 : vector<1x8x32xf32> to vector<8x32xf32>
    %78 = vector.shape_cast %75 : vector<8x32xf32> to vector<1x8x32xf32>
    tpu.vector_store %arg8[%c0_33, %c0_34, %c0_35], %78 {strides = array<i32>} : memref<1x8x32xf32, #tpu.memory_space<vmem>>, vector<1x8x32xf32>,
    return
  }
  func.func @transform_0(%arg0: i32, %arg1: i32) -> (i32, i32, i32) {
    %c0_i32 = arith.constant 0 : i32
    %c0_i32_0 = arith.constant 0 : i32
    return %arg0, %arg1, %c0_i32 : i32, i32, i32
  }
  func.func @transform_1(%arg0: i32, %arg1: i32) -> (i32, i32, i32) {
    %c0_i32 = arith.constant 0 : i32
    %c0_i32_0 = arith.constant 0 : i32
    %c0_i32_1 = arith.constant 0 : i32
    return %arg0, %c0_i32, %c0_i32_0 : i32, i32, i32
  }
  func.func @transform_2(%arg0: i32, %arg1: i32) -> (i32, i32, i32) {
    %c0_i32 = arith.constant 0 : i32
    %c0_i32_0 = arith.constant 0 : i32
    %c0_i32_1 = arith.constant 0 : i32
    return %arg0, %c0_i32, %c0_i32_0 : i32, i32, i32
  }
  func.func @transform_3(%arg0: i32, %arg1: i32) -> (i32, i32) {
    %c0_i32 = arith.constant 0 : i32
    %c0_i32_0 = arith.constant 0 : i32
    %c0_i32_1 = arith.constant 0 : i32
    return %c0_i32, %c0_i32_0 : i32, i32
  }
  func.func @transform_4(%arg0: i32, %arg1: i32) -> (i32, i32) {
    %c0_i32 = arith.constant 0 : i32
    %c0_i32_0 = arith.constant 0 : i32
    %c0_i32_1 = arith.constant 0 : i32
    return %c0_i32, %c0_i32_0 : i32, i32
  }
  func.func @transform_5(%arg0: i32, %arg1: i32) -> (i32, i32) {
    %c0_i32 = arith.constant 0 : i32
    %c0_i32_0 = arith.constant 0 : i32
    %c0_i32_1 = arith.constant 0 : i32
    return %c0_i32, %c0_i32_0 : i32, i32
  }
  func.func @transform_6(%arg0: i32, %arg1: i32) -> (i32, i32, i32) {
    %c0_i32 = arith.constant 0 : i32
    %c0_i32_0 = arith.constant 0 : i32
    return %arg0, %arg1, %c0_i32 : i32, i32, i32
  }
}

</mosaic_0001>

<llo_original>
// kernel: tpu_custom_call.1
$region0: #{tpu_custom_call.1}
  #allocation0 [shape = 'u32[]', space=smem, size = 0x4, offset = 0x4, fixed_abs, tag = 'smem constant byte address 0x4 - core index']
  #allocation1 [shape = 'u32[144,128]{1,0:T(1,128)}', space=vmem, size = 0x12000, scoped, tag = 'internal scratch']
  #allocation2 [shape = 'f32[8,32]{1,0:T(8,128)}', space=vmem, size = 0x1000, scoped, tag = 'scratch operand']
  #allocation3 [shape = 'f32[8,32]{1,0:T(8,128)}', space=vmem, size = 0x1000, scoped, tag = 'scratch operand']
  #allocation4 [shape = 'f32[8,32]{1,0:T(8,128)}', space=vmem, size = 0x1000, scoped, tag = 'scratch operand']
  %s0 = inlined_call_operand.hbm [shape: f32[2,8,32], index: 0, kind: input, shape index: {}]
  %s1 = inlined_call_operand.hbm [shape: f32[2,8,32], index: 1, kind: input, shape index: {}]
  %s2 = inlined_call_operand.hbm [shape: f32[2,8,32], index: 2, kind: input, shape index: {}]
  %s3 = inlined_call_operand.hbm [shape: f32[32,32], index: 3, kind: input, shape index: {}]
  %s4 = inlined_call_operand.hbm [shape: f32[32,32], index: 4, kind: input, shape index: {}]
  %s5 = inlined_call_operand.hbm [shape: f32[32,32], index: 5, kind: input, shape index: {}]
  %s6 = inlined_call_operand.hbm [shape: f32[2,8,32], index: 6, kind: output, shape index: {}]
  %s7 = sld [smem:[#allocation0]]
  $region85: #{tpu_custom_call.1} parent=0
    _
  %s9 = ssub.s32 1, %s7
  %s10 = scalar_select 0, %s9, %s7
  $region1: #{tpu_custom_call.1} parent=0
    #allocation5 [shape = 'u8[8192]{0}', space=vmem, size = 0x2000, scoped, tag = 'input window, operand 0']
    #allocation6 [shape = 's32[2]{0}', space=sflag, size = 0x8, scoped, tag = 'scoped memory for tpu_custom_call.1']
    #allocation7 [shape = 's32[2]{0}', space=sflag, size = 0x8, scoped, tag = 'scoped memory for tpu_custom_call.1']
    #allocation8 [shape = 'u8[8192]{0}', space=vmem, size = 0x2000, scoped, tag = 'input window, operand 1']
    #allocation9 [shape = 's32[2]{0}', space=sflag, size = 0x8, scoped, tag = 'scoped memory for tpu_custom_call.1']
    #allocation10 [shape = 'u8[8192]{0}', space=vmem, size = 0x2000, scoped, tag = 'input window, operand 2']
    #allocation11 [shape = 'u8[16384]{0}', space=vmem, size = 0x4000, scoped, tag = 'input window, operand 3, single buffered']
    #allocation12 [shape = 's32[1]{0}', space=sflag, size = 0x4, scoped, tag = 'scoped memory for tpu_custom_call.1']
    #allocation13 [shape = 'u8[16384]{0}', space=vmem, size = 0x4000, scoped, tag = 'input window, operand 4, single buffered']
    #allocation14 [shape = 'u8[16384]{0}', space=vmem, size = 0x4000, scoped, tag = 'input window, operand 5, single buffered']
    #allocation15 [shape = 's32[1]{0}', space=sflag, size = 0x4, scoped, tag = 'scoped memory for tpu_custom_call.1']
    #allocation16 [shape = 'u8[8192]{0}', space=vmem, size = 0x2000, scoped, tag = 'output window, operand 0']
    %11 = vsyncpa [#allocation6], 0
    %s12 = scalar_lea.sflag [#allocation6], 1
    %13 = vsyncpa %s12, 0
    %14 = vsyncpa [#allocation9], 0
    %s15 = scalar_lea.sflag [#allocation9], 1
    %16 = vsyncpa %s15, 0
    %17 = vsyncpa [#allocation12], 0
    %18 = vsyncpa [#allocation15], 0
    %19 = vsyncpa [#allocation7], 0
    %s20 = scalar_lea.sflag [#allocation7], 1
    %21 = vsyncpa %s20, 0
    loop: start=0, step=1, limit=4
    $region2: #{tpu_custom_call.1} parent=1 // loop_pre_header
      _
    $region3: #{tpu_custom_call.1} parent=1 // loop_header
      %s23 = sphi 0, %s27
      %p24 = scmp.ge.s32.totalorder %s23, 4
      %s30 = sphi 0, %s42
      %s31 = sphi 0, %s38
      %s32 = sphi 0, %s30
      %s33 = sphi 0, %s31
      %s34 = sphi 0, %s32
      %s35 = sphi 0, %s33
      %s47 = sphi 0, %s49
      %s50 = sphi 0, %s47
      %s51 = sphi 0, %s50
      %s67 = sphi 0, %s51
      %s73 = sphi 0, %s75
      %s76 = sphi 0, %s73
      %s77 = sphi 0, %s76
      %s93 = sphi 0, %s77
      %s99 = sphi 0, %s101
      %s102 = sphi 0, %s99
      %s103 = sphi 0, %s102
      %s119 = sphi 0, %s103
      %s123 = sphi 0, %s123
      %s125 = sphi 0, %s123
      %s126 = sphi 0, %s125
      %s140 = sphi 0, %s126
      %s144 = sphi 0, %s144
      %s146 = sphi 0, %s144
      %s147 = sphi 0, %s146
      %s161 = sphi 0, %s147
      %s165 = sphi 0, %s165
      %s167 = sphi 0, %s165
      %s168 = sphi 0, %s167
      %s182 = sphi 0, %s168
      %s190 = sphi 0, %s192
      %s193 = sphi 0, %s190
      %s194 = sphi 0, %s193
      %s210 = sphi 0, %s194
    $region4: #{tpu_custom_call.1} parent=1 // loop_header_branch
      %26 = sbr.rel (%p24) target = $region8
    $region5: #{tpu_custom_call.1} parent=1 // loop_body
      %s28 = ssub.s32 %s23, 1
      %s29 = ssub.s32 %s23, 2
      %s36 = sadd.s32 1, %s31
      %p37 = scmp.ge.s32.totalorder %s36, 1
      %s38 = scalar_select %p37, 0, %s36
      %s39 = sadd.s32 1, %s30
      %s40 = scalar_select %p37, %s39, %s30
      %p41 = scmp.ge.s32.totalorder %s40, 2
      %s42 = scalar_select %p41, 0, %s40
      %s43 = ssub.s32 %s30, %s42
      %s44 = ssub.s32 %s31, %s38
      %s45 = sor.u32 %s43, %s44
      %p46 = scmp.eq.s32.totalorder %s45, 0
      %s48 = sadd.s32 %s47, 1
      %s49 = scalar_select %p46, %s47, %s48
      %p52 = pneg %p46
      %p53 = scmp.eq.s32.totalorder %s23, 1
      %p54 = por %p52, %p53
      %p55 = scmp.ne.s32.totalorder %s47, %s50
      %p56 = scmp.eq.s32.totalorder %s23, 0
      %p57 = por %p55, %p56
      %p58 = scmp.ne.s32.totalorder %s47, %s50
      %p59 = scmp.eq.s32.totalorder %s28, 1
      %p60 = por %p58, %p59
      %p61 = scmp.ne.s32.totalorder %s50, %s51
      %p62 = scmp.eq.s32.totalorder %s28, 0
      %p63 = por %p61, %p62
      %p64 = scmp.ne.s32.totalorder %s50, %s51
      %p65 = scmp.eq.s32.totalorder %s29, 1
      %p66 = por %p64, %p65
      %p68 = scmp.ne.s32.totalorder %s51, %s67
      %p69 = scmp.eq.s32.totalorder %s29, 0
      %p70 = por %p68, %p69
      %s71 = ssub.s32 %s30, %s42
      %p72 = scmp.eq.s32.totalorder %s71, 0
      %s74 = sadd.s32 %s73, 1
      %s75 = scalar_select %p72, %s73, %s74
      %p78 = pneg %p72
      %p79 = scmp.eq.s32.totalorder %s23, 1
      %p80 = por %p78, %p79
      %p81 = scmp.ne.s32.totalorder %s73, %s76
      %p82 = scmp.eq.s32.totalorder %s23, 0
      %p83 = por %p81, %p82
      %p84 = scmp.ne.s32.totalorder %s73, %s76
      %p85 = scmp.eq.s32.totalorder %s28, 1
      %p86 = por %p84, %p85
      %p87 = scmp.ne.s32.totalorder %s76, %s77
      %p88 = scmp.eq.s32.totalorder %s28, 0
      %p89 = por %p87, %p88
      %p90 = scmp.ne.s32.totalorder %s76, %s77
      %p91 = scmp.eq.s32.totalorder %s29, 1
      %p92 = por %p90, %p91
      %p94 = scmp.ne.s32.totalorder %s77, %s93
      %p95 = scmp.eq.s32.totalorder %s29, 0
      %p96 = por %p94, %p95
      %s97 = ssub.s32 %s30, %s42
      %p98 = scmp.eq.s32.totalorder %s97, 0
      %s100 = sadd.s32 %s99, 1
      %s101 = scalar_select %p98, %s99, %s100
      %p104 = pneg %p98
      %p105 = scmp.eq.s32.totalorder %s23, 1
      %p106 = por %p104, %p105
      %p107 = scmp.ne.s32.totalorder %s99, %s102
      %p108 = scmp.eq.s32.totalorder %s23, 0
      %p109 = por %p107, %p108
      %p110 = scmp.ne.s32.totalorder %s99, %s102
      %p111 = scmp.eq.s32.totalorder %s28, 1
      %p112 = por %p110, %p111
      %p113 = scmp.ne.s32.totalorder %s102, %s103
      %p114 = scmp.eq.s32.totalorder %s28, 0
      %p115 = por %p113, %p114
      %p116 = scmp.ne.s32.totalorder %s102, %s103
      %p117 = scmp.eq.s32.totalorder %s29, 1
      %p118 = por %p116, %p117
      %p120 = scmp.ne.s32.totalorder %s103, %s119
      %p121 = scmp.eq.s32.totalorder %s29, 0
      %p122 = por %p120, %p121
      %s124 = sadd.s32 %s123, 1
      %p127 = scmp.eq.s32.totalorder %s23, 1
      %p128 = scmp.ne.s32.totalorder %s123, %s125
      %p129 = scmp.eq.s32.totalorder %s23, 0
      %p130 = por %p128, %p129
      %p131 = scmp.ne.s32.totalorder %s123, %s125
      %p132 = scmp.eq.s32.totalorder %s28, 1
      %p133 = por %p131, %p132
      %p134 = scmp.ne.s32.totalorder %s125, %s126
      %p135 = scmp.eq.s32.totalorder %s28, 0
      %p136 = por %p134, %p135
      %p137 = scmp.ne.s32.totalorder %s125, %s126
      %p138 = scmp.eq.s32.totalorder %s29, 1
      %p139 = por %p137, %p138
      %p141 = scmp.ne.s32.totalorder %s126, %s140
      %p142 = scmp.eq.s32.totalorder %s29, 0
      %p143 = por %p141, %p142
      %s145 = sadd.s32 %s144, 1
      %p148 = scmp.eq.s32.totalorder %s23, 1
      %p149 = scmp.ne.s32.totalorder %s144, %s146
      %p150 = scmp.eq.s32.totalorder %s23, 0
      %p151 = por %p149, %p150
      %p152 = scmp.ne.s32.totalorder %s144, %s146
      %p153 = scmp.eq.s32.totalorder %s28, 1
      %p154 = por %p152, %p153
      %p155 = scmp.ne.s32.totalorder %s146, %s147
      %p156 = scmp.eq.s32.totalorder %s28, 0
      %p157 = por %p155, %p156
      %p158 = scmp.ne.s32.totalorder %s146, %s147
      %p159 = scmp.eq.s32.totalorder %s29, 1
      %p160 = por %p158, %p159
      %p162 = scmp.ne.s32.totalorder %s147, %s161
      %p163 = scmp.eq.s32.totalorder %s29, 0
      %p164 = por %p162, %p163
      %s166 = sadd.s32 %s165, 1
      %p169 = scmp.eq.s32.totalorder %s23, 1
      %p170 = scmp.ne.s32.totalorder %s165, %s167
      %p171 = scmp.eq.s32.totalorder %s23, 0
      %p172 = por %p170, %p171
      %p173 = scmp.ne.s32.totalorder %s165, %s167
      %p174 = scmp.eq.s32.totalorder %s28, 1
      %p175 = por %p173, %p174
      %p176 = scmp.ne.s32.totalorder %s167, %s168
      %p177 = scmp.eq.s32.totalorder %s28, 0
      %p178 = por %p176, %p177
      %p179 = scmp.ne.s32.totalorder %s167, %s168
      %p180 = scmp.eq.s32.totalorder %s29, 1
      %p181 = por %p179, %p180
      %p183 = scmp.ne.s32.totalorder %s168, %s182
      %p184 = scmp.eq.s32.totalorder %s29, 0
      %p185 = por %p183, %p184
      %s186 = ssub.s32 %s30, %s42
      %s187 = ssub.s32 %s31, %s38
      %s188 = sor.u32 %s186, %s187
      %p189 = scmp.eq.s32.totalorder %s188, 0
      %s191 = sadd.s32 %s190, 1
      %s192 = scalar_select %p189, %s190, %s191
      %p195 = pneg %p189
      %p196 = scmp.eq.s32.totalorder %s23, 1
      %p197 = por %p195, %p196
      %p198 = scmp.ne.s32.totalorder %s190, %s193
      %p199 = scmp.eq.s32.totalorder %s23, 0
      %p200 = por %p198, %p199
      %p201 = scmp.ne.s32.totalorder %s190, %s193
      %p202 = scmp.eq.s32.totalorder %s28, 1
      %p203 = por %p201, %p202
      %p204 = scmp.ne.s32.totalorder %s193, %s194
      %p205 = scmp.eq.s32.totalorder %s28, 0
      %p206 = por %p204, %p205
      %p207 = scmp.ne.s32.totalorder %s193, %s194
      %p208 = scmp.eq.s32.totalorder %s29, 1
      %p209 = por %p207, %p208
      %p211 = scmp.ne.s32.totalorder %s194, %s210
      %p212 = scmp.eq.s32.totalorder %s29, 0
      %p213 = por %p211, %p212
      %p214 = scmp.le.s32.totalorder 1, %s23
      %p215 = scmp.lt.s32.totalorder %s23, 3
      %p216 = pnand %p214, %p215
      %p217 = pneg %p216
      // Predicated region
      $region9: #{tpu_custom_call.1} parent=5 // pred_check
        _
      $region10: #{tpu_custom_call.1} parent=5 // pred_check_branch
        %219 = sbr.rel (%p216) target = $region12
      $region11: #{tpu_custom_call.1} parent=5 // pred_region
        %s220 = ssub.s32 %s23, 1
        // Predicated region
        $region13: #{tpu_custom_call.1} parent=11 // pred_check
          %p221 = pneg %p136
        $region14: #{tpu_custom_call.1} parent=11 // pred_check_branch
          %223 = sbr.rel (%p221) target = $region16
        $region15: #{tpu_custom_call.1} parent=11 // pred_region
          %s225 = ssub.s32 512, 512
          %226 = vsyncadd [#allocation12], %s225
          %s227 = sshll.u32 [#allocation11], 4
          %s228 = int_to_ptr.vmem [resolvable:$true] %s227
          %233 = dma.hbm_to_vmem [thread:$0]  %s3, 512, %s228, [#allocation12], 128, 128, 8
        $region16: #{tpu_custom_call.1} parent=11 // pred_fallthru
          _
        // Predicated region
        $region17: #{tpu_custom_call.1} parent=11 // pred_check
          %p234 = pneg %p157
        $region18: #{tpu_custom_call.1} parent=11 // pred_check_branch
          %236 = sbr.rel (%p234) target = $region20
        $region19: #{tpu_custom_call.1} parent=11 // pred_region
          %s238 = ssub.s32 512, 512
          %239 = vsyncadd [#allocation12], %s238
          %s240 = sshll.u32 [#allocation13], 4
          %s241 = int_to_ptr.vmem [resolvable:$true] %s240
          %246 = dma.hbm_to_vmem [thread:$0]  %s4, 512, %s241, [#allocation12], 128, 128, 8
        $region20: #{tpu_custom_call.1} parent=11 // pred_fallthru
          _
        // Predicated region
        $region21: #{tpu_custom_call.1} parent=11 // pred_check
          %p247 = pneg %p178
        $region22: #{tpu_custom_call.1} parent=11 // pred_check_branch
          %249 = sbr.rel (%p247) target = $region24
        $region23: #{tpu_custom_call.1} parent=11 // pred_region
          %s251 = ssub.s32 512, 512
          %252 = vsyncadd [#allocation15], %s251
          %s253 = sshll.u32 [#allocation14], 4
          %s254 = int_to_ptr.vmem [resolvable:$true] %s253
          %259 = dma.hbm_to_vmem [thread:$0]  %s5, 512, %s254, [#allocation15], 128, 128, 8
        $region24: #{tpu_custom_call.1} parent=11 // pred_fallthru
          _
      $region12: #{tpu_custom_call.1} parent=5 // pred_fallthru
        _
      %p260 = scmp.lt.s32.totalorder %s23, 2
      // Predicated region
      $region25: #{tpu_custom_call.1} parent=5 // pred_check
        %p261 = pneg %p260
      $region26: #{tpu_custom_call.1} parent=5 // pred_check_branch
        %263 = sbr.rel (%p261) target = $region28
      $region27: #{tpu_custom_call.1} parent=5 // pred_region
        // Predicated region
        $region29: #{tpu_custom_call.1} parent=27 // pred_check
          %p264 = pneg %p57
        $region30: #{tpu_custom_call.1} parent=27 // pred_check_branch
          %266 = sbr.rel (%p264) target = $region32
        $region31: #{tpu_custom_call.1} parent=27 // pred_region
          %s267 = sand.u32 %s47, 1
          %s268 = scalar_lea.sflag [#allocation6], %s267
          %s269 = sand.u32 %s47, 1
          %s270 = smul.addr %s269, 8
          %s271 = scalar_lea.vmem [#allocation5], %s270
          %s273 = ssub.s32 128, 128
          %274 = vsyncadd %s268, %s273
          %s275 = sadd.s32 %s31, %s30
          %s276 = smul.addr %s275, 128
          %s277 = scalar_lea.hbm %s0, %s276
          %s279 = sshll.u32 %s271, 4
          %s280 = int_to_ptr.vmem [resolvable:$true] %s279
          %282 = dma.hbm_to_vmem [thread:$0]  %s277, 128, %s280, %s268
        $region32: #{tpu_custom_call.1} parent=27 // pred_fallthru
          _
        // Predicated region
        $region33: #{tpu_custom_call.1} parent=27 // pred_check
          %p283 = pneg %p83
        $region34: #{tpu_custom_call.1} parent=27 // pred_check_branch
          %285 = sbr.rel (%p283) target = $region36
        $region35: #{tpu_custom_call.1} parent=27 // pred_region
          %s286 = sand.u32 %s23, 1
          %s287 = scalar_lea.sflag [#allocation9], %s286
          %s288 = sand.u32 %s73, 1
          %s289 = smul.addr %s288, 8
          %s290 = scalar_lea.vmem [#allocation8], %s289
          %s292 = ssub.s32 128, 128
          %293 = vsyncadd %s287, %s292
          %s294 = smul.addr %s30, 128
          %s295 = scalar_lea.hbm %s1, %s294
          %s297 = sshll.u32 %s290, 4
          %s298 = int_to_ptr.vmem [resolvable:$true] %s297
          %300 = dma.hbm_to_vmem [thread:$0]  %s295, 128, %s298, %s287
        $region36: #{tpu_custom_call.1} parent=27 // pred_fallthru
          _
        // Predicated region
        $region37: #{tpu_custom_call.1} parent=27 // pred_check
          %p301 = pneg %p109
        $region38: #{tpu_custom_call.1} parent=27 // pred_check_branch
          %303 = sbr.rel (%p301) target = $region40
        $region39: #{tpu_custom_call.1} parent=27 // pred_region
          %s304 = sand.u32 %s23, 1
          %s305 = scalar_lea.sflag [#allocation9], %s304
          %s306 = sand.u32 %s99, 1
          %s307 = smul.addr %s306, 8
          %s308 = scalar_lea.vmem [#allocation10], %s307
          %s310 = ssub.s32 128, 128
          %311 = vsyncadd %s305, %s310
          %s312 = smul.addr %s30, 128
          %s313 = scalar_lea.hbm %s2, %s312
          %s315 = sshll.u32 %s308, 4
          %s316 = int_to_ptr.vmem [resolvable:$true] %s315
          %318 = dma.hbm_to_vmem [thread:$0]  %s313, 128, %s316, %s305
        $region40: #{tpu_custom_call.1} parent=27 // pred_fallthru
          _
      $region28: #{tpu_custom_call.1} parent=5 // pred_fallthru
        _
      %p319 = scmp.le.s32.totalorder 1, %s23
      %p320 = scmp.lt.s32.totalorder %s23, 3
      %p321 = pnand %p319, %p320
      %p322 = pneg %p321
      // Predicated region
      $region41: #{tpu_custom_call.1} parent=5 // pred_check
        _
      $region42: #{tpu_custom_call.1} parent=5 // pred_check_branch
        %324 = sbr.rel (%p321) target = $region44
      $region43: #{tpu_custom_call.1} parent=5 // pred_region
        %s325 = ssub.s32 %s23, 1
        %s326 = sand.u32 %s50, 1
        %s327 = scalar_lea.sflag [#allocation6], %s326
        %s328 = sand.u32 %s50, 1
        %s329 = smul.addr %s328, 8
        %s330 = scalar_lea.vmem [#allocation5], %s329
        // Predicated region
        $region45: #{tpu_custom_call.1} parent=43 // pred_check
          %p331 = pneg %p63
        $region46: #{tpu_custom_call.1} parent=43 // pred_check_branch
          %333 = sbr.rel (%p331) target = $region48
        $region47: #{tpu_custom_call.1} parent=43 // pred_region
          %334 = dma.done %s327, 128
        $region48: #{tpu_custom_call.1} parent=43 // pred_fallthru
          _
        %s335 = sand.u32 %s28, 1
        %s336 = scalar_lea.sflag [#allocation9], %s335
        %s337 = sand.u32 %s76, 1
        %s338 = smul.addr %s337, 8
        %s339 = scalar_lea.vmem [#allocation8], %s338
        // Predicated region
        $region49: #{tpu_custom_call.1} parent=43 // pred_check
          %p340 = pneg %p89
        $region50: #{tpu_custom_call.1} parent=43 // pred_check_branch
          %342 = sbr.rel (%p340) target = $region52
        $region51: #{tpu_custom_call.1} parent=43 // pred_region
          %343 = dma.done %s336, 128
        $region52: #{tpu_custom_call.1} parent=43 // pred_fallthru
          _
        %s344 = sand.u32 %s28, 1
        %s345 = scalar_lea.sflag [#allocation9], %s344
        %s346 = sand.u32 %s102, 1
        %s347 = smul.addr %s346, 8
        %s348 = scalar_lea.vmem [#allocation10], %s347
        // Predicated region
        $region53: #{tpu_custom_call.1} parent=43 // pred_check
          %p349 = pneg %p115
        $region54: #{tpu_custom_call.1} parent=43 // pred_check_branch
          %351 = sbr.rel (%p349) target = $region56
        $region55: #{tpu_custom_call.1} parent=43 // pred_region
          %352 = dma.done %s345, 128
        $region56: #{tpu_custom_call.1} parent=43 // pred_fallthru
          _
        // Predicated region
        $region57: #{tpu_custom_call.1} parent=43 // pred_check
          %p353 = pneg %p136
        $region58: #{tpu_custom_call.1} parent=43 // pred_check_branch
          %355 = sbr.rel (%p353) target = $region60
        $region59: #{tpu_custom_call.1} parent=43 // pred_region
          %356 = dma.done [#allocation12], 512
        $region60: #{tpu_custom_call.1} parent=43 // pred_fallthru
          _
        // Predicated region
        $region61: #{tpu_custom_call.1} parent=43 // pred_check
          %p357 = pneg %p157
        $region62: #{tpu_custom_call.1} parent=43 // pred_check_branch
          %359 = sbr.rel (%p357) target = $region64
        $region63: #{tpu_custom_call.1} parent=43 // pred_region
          %360 = dma.done [#allocation12], 512
        $region64: #{tpu_custom_call.1} parent=43 // pred_fallthru
          _
        // Predicated region
        $region65: #{tpu_custom_call.1} parent=43 // pred_check
          %p361 = pneg %p178
        $region66: #{tpu_custom_call.1} parent=43 // pred_check_branch
          %363 = sbr.rel (%p361) target = $region68
        $region67: #{tpu_custom_call.1} parent=43 // pred_region
          %364 = dma.done [#allocation15], 512
        $region68: #{tpu_custom_call.1} parent=43 // pred_fallthru
          _
        %s365 = sand.u32 %s50, 1
        %s366 = scalar_lea.sflag [#allocation6], %s365
        %s367 = sand.u32 %s50, 1
        %s368 = smul.addr %s367, 8
        %s369 = scalar_lea.vmem [#allocation5], %s368
        %p370 = pneg %p63
        %p371 = pneg %p60
        %s372 = sand.u32 %s28, 1
        %s373 = scalar_lea.sflag [#allocation9], %s372
        %s374 = sand.u32 %s76, 1
        %s375 = smul.addr %s374, 8
        %s376 = scalar_lea.vmem [#allocation8], %s375
        %p377 = pneg %p89
        %p378 = pneg %p86
        %s379 = sand.u32 %s28, 1
        %s380 = scalar_lea.sflag [#allocation9], %s379
        %s381 = sand.u32 %s102, 1
        %s382 = smul.addr %s381, 8
        %s383 = scalar_lea.vmem [#allocation10], %s382
        %p384 = pneg %p115
        %p385 = pneg %p112
        %p386 = pneg %p136
        %p387 = pneg %p133
        %p388 = pneg %p157
        %p389 = pneg %p154
        %p390 = pneg %p178
        %p391 = pneg %p175
        %p392 = pneg %p206
        %p393 = pneg %p203
        %s394 = sand.u32 %s193, 1
        %s395 = scalar_lea.sflag [#allocation7], %s394
        %s396 = sand.u32 %s193, 1
        %s397 = smul.addr %s396, 8
        %s398 = scalar_lea.vmem [#allocation16], %s397
        %p399 = scmp.eq.s32.totalorder %s33, 0
        // Predicated region
        $region69: #{tpu_custom_call.1} parent=43 // pred_check
          %p400 = pneg %p399
        $region70: #{tpu_custom_call.1} parent=43 // pred_check_branch
          %402 = sbr.rel (%p400) target = $region72
        $region71: #{tpu_custom_call.1} parent=43 // pred_region
          %v403 = vld [vmem:[%s339] sm:$0xff]
          %v404 = vld [vmem:[%s348] sm:$0xff]
          %v405 = vld [vmem:[#allocation13] sm:$0xff]
          %v406 = vld [vmem:[#allocation13 + $0x8] sm:$0xff]
          %v407 = vld [vmem:[#allocation13 + $0x10] sm:$0xff]
          %v408 = vld [vmem:[#allocation13 + $0x18] sm:$0xff]
          %vm409 = vcmask 261120
          %v411 = vsel %vm409, %v403, 0
          %413 = vmatprep.subr.mxu0 0.0
          %414 = vmatpush1.msra.mxu0 %v405
          %415 = vmatprep.subr.mxu0 0.0
          %416 = vmatpush1.msra.mxu0 %v406
          %417 = vmatprep.subr.mxu0 0.0
          %418 = vmatpush1.msra.mxu0 %v407
          %419 = vmatprep.subr.mxu0 0.0
          %420 = vmatpush1.msra.mxu0 %v408
          %421 = vmatprep.subr.mxu0 0.0
          %422 = vmatpush1.msra.mxu0 0.0
          %423 = vmatprep.subr.mxu0 0.0
          %424 = vmatpush1.msra.mxu0 0.0
          %425 = vmatprep.subr.mxu0 0.0
          %426 = vmatpush1.msra.mxu0 0.0
          %427 = vmatprep.subr.mxu0 0.0
          %428 = vmatpush1.msra.mxu0 0.0
          %429 = vmatprep.subr.mxu0 0.0
          %430 = vmatpush1.msra.mxu0 0.0
          %431 = vmatprep.subr.mxu0 0.0
          %432 = vmatpush1.msra.mxu0 0.0
          %433 = vmatprep.subr.mxu0 0.0
          %434 = vmatpush1.msra.mxu0 0.0
          %435 = vmatprep.subr.mxu0 0.0
          %436 = vmatpush1.msra.mxu0 0.0
          %437 = vmatprep.subr.mxu0 0.0
          %438 = vmatpush1.msra.mxu0 0.0
          %439 = vmatprep.subr.mxu0 0.0
          %440 = vmatpush1.msra.mxu0 0.0
          %441 = vmatprep.subr.mxu0 0.0
          %442 = vmatpush1.msra.mxu0 0.0
          %443 = vmatprep.subr.mxu0 0.0
          %444 = vmatpush1.msra.mxu0 0.0
          %445 = vmatprep.subr.mxu0 0.0
          %446 = vmatpush1.msra.mxu0 0.0
          %447 = vmatprep.subr.mxu0 0.0
          %448 = vmatpush1.msra.mxu0 0.0
          %449 = vmatprep.subr.mxu0 0.0
          %450 = vmatpush1.msra.mxu0 0.0
          %451 = vmatprep.subr.mxu0 0.0
          %452 = vmatpush1.msra.mxu0 0.0
          %453 = vmatprep.subr.mxu0 0.0
          %454 = vmatpush1.msra.mxu0 0.0
          %455 = vmatprep.subr.mxu0 0.0
          %456 = vmatpush1.msra.mxu0 0.0
          %457 = vmatprep.subr.mxu0 0.0
          %458 = vmatpush1.msra.mxu0 0.0
          %459 = vmatprep.subr.mxu0 0.0
          %460 = vmatpush1.msra.mxu0 0.0
          %461 = vmatprep.subr.mxu0 0.0
          %462 = vmatpush1.msra.mxu0 0.0
          %463 = vmatprep.subr.mxu0 0.0
          %464 = vmatpush1.msra.mxu0 0.0
          %465 = vmatprep.subr.mxu0 0.0
          %466 = vmatpush1.msra.mxu0 0.0
          %467 = vmatprep.subr.mxu0 0.0
          %468 = vmatpush1.msra.mxu0 0.0
          %469 = vmatprep.subr.mxu0 0.0
          %470 = vmatpush1.msra.mxu0 0.0
          %471 = vmatprep.subr.mxu0 0.0
          %472 = vmatpush1.msra.mxu0 0.0
          %473 = vmatprep.subr.mxu0 0.0
          %474 = vmatpush1.msra.mxu0 0.0
          %475 = vmatprep.subr.mxu0 0.0
          %476 = vmatpush1.msra.mxu0 0.0
          %477 = vmatprep.mubr.f32.mxu0 0.0
          %478 = vmatmul.mubr.f32.gmra.mrb[0].mxu0 %v411
          %v479 = vpop.f32.mrb[0].mxu0
          %v480 = vadd.f32 0.0, %v479
          %v481 = vpop.f32.mrb[0].mxu0
          %482 = vdwg.mxu0
          %483 = vst.msk [vmem:[#allocation2] sm:$0xff] %vm409, %v480
          %v484 = vld [vmem:[#allocation14] sm:$0xff]
          %v485 = vld [vmem:[#allocation14 + $0x8] sm:$0xff]
          %v486 = vld [vmem:[#allocation14 + $0x10] sm:$0xff]
          %v487 = vld [vmem:[#allocation14 + $0x18] sm:$0xff]
          %v489 = vsel %vm409, %v404, 0
          %491 = vmatprep.subr.mxu0 0.0
          %492 = vmatpush1.msra.mxu0 %v484
          %493 = vmatprep.subr.mxu0 0.0
          %494 = vmatpush1.msra.mxu0 %v485
          %495 = vmatprep.subr.mxu0 0.0
          %496 = vmatpush1.msra.mxu0 %v486
          %497 = vmatprep.subr.mxu0 0.0
          %498 = vmatpush1.msra.mxu0 %v487
          %499 = vmatprep.subr.mxu0 0.0
          %500 = vmatpush1.msra.mxu0 0.0
          %501 = vmatprep.subr.mxu0 0.0
          %502 = vmatpush1.msra.mxu0 0.0
          %503 = vmatprep.subr.mxu0 0.0
          %504 = vmatpush1.msra.mxu0 0.0
          %505 = vmatprep.subr.mxu0 0.0
          %506 = vmatpush1.msra.mxu0 0.0
          %507 = vmatprep.subr.mxu0 0.0
          %508 = vmatpush1.msra.mxu0 0.0
          %509 = vmatprep.subr.mxu0 0.0
          %510 = vmatpush1.msra.mxu0 0.0
          %511 = vmatprep.subr.mxu0 0.0
          %512 = vmatpush1.msra.mxu0 0.0
          %513 = vmatprep.subr.mxu0 0.0
          %514 = vmatpush1.msra.mxu0 0.0
          %515 = vmatprep.subr.mxu0 0.0
          %516 = vmatpush1.msra.mxu0 0.0
          %517 = vmatprep.subr.mxu0 0.0
          %518 = vmatpush1.msra.mxu0 0.0
          %519 = vmatprep.subr.mxu0 0.0
          %520 = vmatpush1.msra.mxu0 0.0
          %521 = vmatprep.subr.mxu0 0.0
          %522 = vmatpush1.msra.mxu0 0.0
          %523 = vmatprep.subr.mxu0 0.0
          %524 = vmatpush1.msra.mxu0 0.0
          %525 = vmatprep.subr.mxu0 0.0
          %526 = vmatpush1.msra.mxu0 0.0
          %527 = vmatprep.subr.mxu0 0.0
          %528 = vmatpush1.msra.mxu0 0.0
          %529 = vmatprep.subr.mxu0 0.0
          %530 = vmatpush1.msra.mxu0 0.0
          %531 = vmatprep.subr.mxu0 0.0
          %532 = vmatpush1.msra.mxu0 0.0
          %533 = vmatprep.subr.mxu0 0.0
          %534 = vmatpush1.msra.mxu0 0.0
          %535 = vmatprep.subr.mxu0 0.0
          %536 = vmatpush1.msra.mxu0 0.0
          %537 = vmatprep.subr.mxu0 0.0
          %538 = vmatpush1.msra.mxu0 0.0
          %539 = vmatprep.subr.mxu0 0.0
          %540 = vmatpush1.msra.mxu0 0.0
          %541 = vmatprep.subr.mxu0 0.0
          %542 = vmatpush1.msra.mxu0 0.0
          %543 = vmatprep.subr.mxu0 0.0
          %544 = vmatpush1.msra.mxu0 0.0
          %545 = vmatprep.subr.mxu0 0.0
          %546 = vmatpush1.msra.mxu0 0.0
          %547 = vmatprep.subr.mxu0 0.0
          %548 = vmatpush1.msra.mxu0 0.0
          %549 = vmatprep.subr.mxu0 0.0
          %550 = vmatpush1.msra.mxu0 0.0
          %551 = vmatprep.subr.mxu0 0.0
          %552 = vmatpush1.msra.mxu0 0.0
          %553 = vmatprep.subr.mxu0 0.0
          %554 = vmatpush1.msra.mxu0 0.0
          %555 = vmatprep.mubr.f32.mxu0 0.0
          %556 = vmatmul.mubr.f32.gmra.mrb[0].mxu0 %v489
          %v557 = vpop.f32.mrb[0].mxu0
          %v558 = vadd.f32 0.0, %v557
          %v559 = vpop.f32.mrb[0].mxu0
          %560 = vdwg.mxu0
          %561 = vst.msk [vmem:[#allocation3] sm:$0xff] %vm409, %v558
        $region72: #{tpu_custom_call.1} parent=43 // pred_fallthru
          _
        %v562 = vld [vmem:[%s330] sm:$0xff]
        %v563 = vld [vmem:[#allocation11] sm:$0xff]
        %v564 = vld [vmem:[#allocation11 + $0x8] sm:$0xff]
        %v565 = vld [vmem:[#allocation11 + $0x10] sm:$0xff]
        %v566 = vld [vmem:[#allocation11 + $0x18] sm:$0xff]
        %vm567 = vcmask 261120
        %v569 = vsel %vm567, %v562, 0
        %571 = vmatprep.subr.mxu0 0.0
        %572 = vmatpush1.msra.mxu0 %v563
        %573 = vmatprep.subr.mxu0 0.0
        %574 = vmatpush1.msra.mxu0 %v564
        %575 = vmatprep.subr.mxu0 0.0
        %576 = vmatpush1.msra.mxu0 %v565
        %577 = vmatprep.subr.mxu0 0.0
        %578 = vmatpush1.msra.mxu0 %v566
        %579 = vmatprep.subr.mxu0 0.0
        %580 = vmatpush1.msra.mxu0 0.0
        %581 = vmatprep.subr.mxu0 0.0
        %582 = vmatpush1.msra.mxu0 0.0
        %583 = vmatprep.subr.mxu0 0.0
        %584 = vmatpush1.msra.mxu0 0.0
        %585 = vmatprep.subr.mxu0 0.0
        %586 = vmatpush1.msra.mxu0 0.0
        %587 = vmatprep.subr.mxu0 0.0
        %588 = vmatpush1.msra.mxu0 0.0
        %589 = vmatprep.subr.mxu0 0.0
        %590 = vmatpush1.msra.mxu0 0.0
        %591 = vmatprep.subr.mxu0 0.0
        %592 = vmatpush1.msra.mxu0 0.0
        %593 = vmatprep.subr.mxu0 0.0
        %594 = vmatpush1.msra.mxu0 0.0
        %595 = vmatprep.subr.mxu0 0.0
        %596 = vmatpush1.msra.mxu0 0.0
        %597 = vmatprep.subr.mxu0 0.0
        %598 = vmatpush1.msra.mxu0 0.0
        %599 = vmatprep.subr.mxu0 0.0
        %600 = vmatpush1.msra.mxu0 0.0
        %601 = vmatprep.subr.mxu0 0.0
        %602 = vmatpush1.msra.mxu0 0.0
        %603 = vmatprep.subr.mxu0 0.0
        %604 = vmatpush1.msra.mxu0 0.0
        %605 = vmatprep.subr.mxu0 0.0
        %606 = vmatpush1.msra.mxu0 0.0
        %607 = vmatprep.subr.mxu0 0.0
        %608 = vmatpush1.msra.mxu0 0.0
        %609 = vmatprep.subr.mxu0 0.0
        %610 = vmatpush1.msra.mxu0 0.0
        %611 = vmatprep.subr.mxu0 0.0
        %612 = vmatpush1.msra.mxu0 0.0
        %613 = vmatprep.subr.mxu0 0.0
        %614 = vmatpush1.msra.mxu0 0.0
        %615 = vmatprep.subr.mxu0 0.0
        %616 = vmatpush1.msra.mxu0 0.0
        %617 = vmatprep.subr.mxu0 0.0
        %618 = vmatpush1.msra.mxu0 0.0
        %619 = vmatprep.subr.mxu0 0.0
        %620 = vmatpush1.msra.mxu0 0.0
        %621 = vmatprep.subr.mxu0 0.0
        %622 = vmatpush1.msra.mxu0 0.0
        %623 = vmatprep.subr.mxu0 0.0
        %624 = vmatpush1.msra.mxu0 0.0
        %625 = vmatprep.subr.mxu0 0.0
        %626 = vmatpush1.msra.mxu0 0.0
        %627 = vmatprep.subr.mxu0 0.0
        %628 = vmatpush1.msra.mxu0 0.0
        %629 = vmatprep.subr.mxu0 0.0
        %630 = vmatpush1.msra.mxu0 0.0
        %631 = vmatprep.subr.mxu0 0.0
        %632 = vmatpush1.msra.mxu0 0.0
        %633 = vmatprep.subr.mxu0 0.0
        %634 = vmatpush1.msra.mxu0 0.0
        %635 = vmatprep.mubr.f32.mxu0 0.0
        %636 = vmatmul.mubr.f32.gmra.mrb[0].mxu0 %v569
        %v637 = vpop.f32.mrb[0].mxu0
        %v638 = vadd.f32 0.0, %v637
        %v639 = vpop.f32.mrb[0].mxu0
        %640 = vdwg.mxu0
        %v641 = vmul.f32 %v638, 0.17677669
        %v642 = vld [vmem:[#allocation2] sm:$0xff]
        %v643 = vld [vmem:[#allocation3] sm:$0xff]
        %vm644 = vcmask 64512
        %v646 = vsel %vm644, %v641, 0
        %v649 = vsel %vm644, %v642, 0
        %651 = vmatprep.subr.mxu0 0.0
        %652 = vmatpush1.xpose.msra.mxu0 %v649
        %653 = vmatprep.subr.mxu0 0.0
        %654 = vmatpush1.xpose.msra.mxu0 0.0
        %655 = vmatprep.subr.mxu0 0.0
        %656 = vmatpush1.xpose.msra.mxu0 0.0
        %657 = vmatprep.subr.mxu0 0.0
        %658 = vmatpush1.xpose.msra.mxu0 0.0
        %659 = vmatprep.subr.mxu0 0.0
        %660 = vmatpush1.xpose.msra.mxu0 0.0
        %661 = vmatprep.subr.mxu0 0.0
        %662 = vmatpush1.xpose.msra.mxu0 0.0
        %663 = vmatprep.subr.mxu0 0.0
        %664 = vmatpush1.xpose.msra.mxu0 0.0
        %665 = vmatprep.subr.mxu0 0.0
        %666 = vmatpush1.xpose.msra.mxu0 0.0
        %667 = vmatprep.subr.mxu0 0.0
        %668 = vmatpush1.xpose.msra.mxu0 0.0
        %669 = vmatprep.subr.mxu0 0.0
        %670 = vmatpush1.xpose.msra.mxu0 0.0
        %671 = vmatprep.subr.mxu0 0.0
        %672 = vmatpush1.xpose.msra.mxu0 0.0
        %673 = vmatprep.subr.mxu0 0.0
        %674 = vmatpush1.xpose.msra.mxu0 0.0
        %675 = vmatprep.subr.mxu0 0.0
        %676 = vmatpush1.xpose.msra.mxu0 0.0
        %677 = vmatprep.subr.mxu0 0.0
        %678 = vmatpush1.xpose.msra.mxu0 0.0
        %679 = vmatprep.subr.mxu0 0.0
        %680 = vmatpush1.xpose.msra.mxu0 0.0
        %681 = vmatprep.subr.mxu0 0.0
        %682 = vmatpush1.xpose.msra.mxu0 0.0
        %683 = vmatprep.subr.mxu0 0.0
        %684 = vmatpush1.xpose.msra.mxu0 0.0
        %685 = vmatprep.subr.mxu0 0.0
        %686 = vmatpush1.xpose.msra.mxu0 0.0
        %687 = vmatprep.subr.mxu0 0.0
        %688 = vmatpush1.xpose.msra.mxu0 0.0
        %689 = vmatprep.subr.mxu0 0.0
        %690 = vmatpush1.xpose.msra.mxu0 0.0
        %691 = vmatprep.subr.mxu0 0.0
        %692 = vmatpush1.xpose.msra.mxu0 0.0
        %693 = vmatprep.subr.mxu0 0.0
        %694 = vmatpush1.xpose.msra.mxu0 0.0
        %695 = vmatprep.subr.mxu0 0.0
        %696 = vmatpush1.xpose.msra.mxu0 0.0
        %697 = vmatprep.subr.mxu0 0.0
        %698 = vmatpush1.xpose.msra.mxu0 0.0
        %699 = vmatprep.subr.mxu0 0.0
        %700 = vmatpush1.xpose.msra.mxu0 0.0
        %701 = vmatprep.subr.mxu0 0.0
        %702 = vmatpush1.xpose.msra.mxu0 0.0
        %703 = vmatprep.subr.mxu0 0.0
        %704 = vmatpush1.xpose.msra.mxu0 0.0
        %705 = vmatprep.subr.mxu0 0.0
        %706 = vmatpush1.xpose.msra.mxu0 0.0
        %707 = vmatprep.subr.mxu0 0.0
        %708 = vmatpush1.xpose.msra.mxu0 0.0
        %709 = vmatprep.subr.mxu0 0.0
        %710 = vmatpush1.xpose.msra.mxu0 0.0
        %711 = vmatprep.subr.mxu0 0.0
        %712 = vmatpush1.xpose.msra.mxu0 0.0
        %713 = vmatprep.subr.mxu0 0.0
        %714 = vmatpush1.xpose.msra.mxu0 0.0
        %715 = vmatprep.mubr.f32.mxu0 0.0
        %716 = vmatmul.mubr.f32.gmra.mrb[0].mxu0 %v646
        %v717 = vpop.f32.mrb[0].mxu0
        %v718 = vadd.f32 0.0, %v717
        %v719 = vpop.f32.mrb[0].mxu0
        %720 = vdwg.mxu0
        %v721 = vsel %vm644, %v718, -inf
        %722 = vmax.xlane.f32.xlu0 %v721
        %v723 = vpop.xlane.xlu0 %722
        %v724 = vsub.f32 %v718, %v723
        %v725 = vmul.f32 %v724, 1.442695
        %v726 = vpow.pop %v725
        %v727 = vsel %vm644, %v726, 0.0
        %728 = vadd.xlane.f32.xlu0 %v727
        %v729 = vpop.xlane.xlu0 %728
        %v730 = vrcp.pop %v729
        %v731 = vmul.f32 %v726, %v730
        %v733 = vsel %vm644, %v731, 0
        %735 = vmatprep.subr.mxu0 0.0
        %736 = vmatpush1.msra.mxu0 %v643
        %737 = vmatprep.subr.mxu0 0.0
        %738 = vmatpush1.msra.mxu0 0.0
        %739 = vmatprep.subr.mxu0 0.0
        %740 = vmatpush1.msra.mxu0 0.0
        %741 = vmatprep.subr.mxu0 0.0
        %742 = vmatpush1.msra.mxu0 0.0
        %743 = vmatprep.subr.mxu0 0.0
        %744 = vmatpush1.msra.mxu0 0.0
        %745 = vmatprep.subr.mxu0 0.0
        %746 = vmatpush1.msra.mxu0 0.0
        %747 = vmatprep.subr.mxu0 0.0
        %748 = vmatpush1.msra.mxu0 0.0
        %749 = vmatprep.subr.mxu0 0.0
        %750 = vmatpush1.msra.mxu0 0.0
        %751 = vmatprep.subr.mxu0 0.0
        %752 = vmatpush1.msra.mxu0 0.0
        %753 = vmatprep.subr.mxu0 0.0
        %754 = vmatpush1.msra.mxu0 0.0
        %755 = vmatprep.subr.mxu0 0.0
        %756 = vmatpush1.msra.mxu0 0.0
        %757 = vmatprep.subr.mxu0 0.0
        %758 = vmatpush1.msra.mxu0 0.0
        %759 = vmatprep.subr.mxu0 0.0
        %760 = vmatpush1.msra.mxu0 0.0
        %761 = vmatprep.subr.mxu0 0.0
        %762 = vmatpush1.msra.mxu0 0.0
        %763 = vmatprep.subr.mxu0 0.0
        %764 = vmatpush1.msra.mxu0 0.0
        %765 = vmatprep.subr.mxu0 0.0
        %766 = vmatpush1.msra.mxu0 0.0
        %767 = vmatprep.subr.mxu0 0.0
        %768 = vmatpush1.msra.mxu0 0.0
        %769 = vmatprep.subr.mxu0 0.0
        %770 = vmatpush1.msra.mxu0 0.0
        %771 = vmatprep.subr.mxu0 0.0
        %772 = vmatpush1.msra.mxu0 0.0
        %773 = vmatprep.subr.mxu0 0.0
        %774 = vmatpush1.msra.mxu0 0.0
        %775 = vmatprep.subr.mxu0 0.0
        %776 = vmatpush1.msra.mxu0 0.0
        %777 = vmatprep.subr.mxu0 0.0
        %778 = vmatpush1.msra.mxu0 0.0
        %779 = vmatprep.subr.mxu0 0.0
        %780 = vmatpush1.msra.mxu0 0.0
        %781 = vmatprep.subr.mxu0 0.0
        %782 = vmatpush1.msra.mxu0 0.0
        %783 = vmatprep.subr.mxu0 0.0
        %784 = vmatpush1.msra.mxu0 0.0
        %785 = vmatprep.subr.mxu0 0.0
        %786 = vmatpush1.msra.mxu0 0.0
        %787 = vmatprep.subr.mxu0 0.0
        %788 = vmatpush1.msra.mxu0 0.0
        %789 = vmatprep.subr.mxu0 0.0
        %790 = vmatpush1.msra.mxu0 0.0
        %791 = vmatprep.subr.mxu0 0.0
        %792 = vmatpush1.msra.mxu0 0.0
        %793 = vmatprep.subr.mxu0 0.0
        %794 = vmatpush1.msra.mxu0 0.0
        %795 = vmatprep.subr.mxu0 0.0
        %796 = vmatpush1.msra.mxu0 0.0
        %797 = vmatprep.subr.mxu0 0.0
        %798 = vmatpush1.msra.mxu0 0.0
        %799 = vmatprep.mubr.f32.mxu0 0.0
        %800 = vmatmul.mubr.f32.gmra.mrb[0].mxu0 %v733
        %v801 = vpop.f32.mrb[0].mxu0
        %v802 = vadd.f32 0.0, %v801
        %v803 = vpop.f32.mrb[0].mxu0
        %804 = vdwg.mxu0
        %805 = vst.msk [vmem:[#allocation4] sm:$0xff] %vm644, %v802
        %806 = vrot.lane.b32.xlu0 %v641, 120
        %v807 = vpop.permute.xlu0 %806
        %808 = vrot.lane.b32.xlu0 %v642, 120
        %v809 = vpop.permute.xlu0 %808
        %v810 = vsel %vm644, %v807, 0
        %v812 = vsel %vm644, %v809, 0
        %814 = vmatprep.subr.mxu0 0.0
        %815 = vmatpush1.xpose.msra.mxu0 %v812
        %816 = vmatprep.subr.mxu0 0.0
        %817 = vmatpush1.xpose.msra.mxu0 0.0
        %818 = vmatprep.subr.mxu0 0.0
        %819 = vmatpush1.xpose.msra.mxu0 0.0
        %820 = vmatprep.subr.mxu0 0.0
        %821 = vmatpush1.xpose.msra.mxu0 0.0
        %822 = vmatprep.subr.mxu0 0.0
        %823 = vmatpush1.xpose.msra.mxu0 0.0
        %824 = vmatprep.subr.mxu0 0.0
        %825 = vmatpush1.xpose.msra.mxu0 0.0
        %826 = vmatprep.subr.mxu0 0.0
        %827 = vmatpush1.xpose.msra.mxu0 0.0
        %828 = vmatprep.subr.mxu0 0.0
        %829 = vmatpush1.xpose.msra.mxu0 0.0
        %830 = vmatprep.subr.mxu0 0.0
        %831 = vmatpush1.xpose.msra.mxu0 0.0
        %832 = vmatprep.subr.mxu0 0.0
        %833 = vmatpush1.xpose.msra.mxu0 0.0
        %834 = vmatprep.subr.mxu0 0.0
        %835 = vmatpush1.xpose.msra.mxu0 0.0
        %836 = vmatprep.subr.mxu0 0.0
        %837 = vmatpush1.xpose.msra.mxu0 0.0
        %838 = vmatprep.subr.mxu0 0.0
        %839 = vmatpush1.xpose.msra.mxu0 0.0
        %840 = vmatprep.subr.mxu0 0.0
        %841 = vmatpush1.xpose.msra.mxu0 0.0
        %842 = vmatprep.subr.mxu0 0.0
        %843 = vmatpush1.xpose.msra.mxu0 0.0
        %844 = vmatprep.subr.mxu0 0.0
        %845 = vmatpush1.xpose.msra.mxu0 0.0
        %846 = vmatprep.subr.mxu0 0.0
        %847 = vmatpush1.xpose.msra.mxu0 0.0
        %848 = vmatprep.subr.mxu0 0.0
        %849 = vmatpush1.xpose.msra.mxu0 0.0
        %850 = vmatprep.subr.mxu0 0.0
        %851 = vmatpush1.xpose.msra.mxu0 0.0
        %852 = vmatprep.subr.mxu0 0.0
        %853 = vmatpush1.xpose.msra.mxu0 0.0
        %854 = vmatprep.subr.mxu0 0.0
        %855 = vmatpush1.xpose.msra.mxu0 0.0
        %856 = vmatprep.subr.mxu0 0.0
        %857 = vmatpush1.xpose.msra.mxu0 0.0
        %858 = vmatprep.subr.mxu0 0.0
        %859 = vmatpush1.xpose.msra.mxu0 0.0
        %860 = vmatprep.subr.mxu0 0.0
        %861 = vmatpush1.xpose.msra.mxu0 0.0
        %862 = vmatprep.subr.mxu0 0.0
        %863 = vmatpush1.xpose.msra.mxu0 0.0
        %864 = vmatprep.subr.mxu0 0.0
        %865 = vmatpush1.xpose.msra.mxu0 0.0
        %866 = vmatprep.subr.mxu0 0.0
        %867 = vmatpush1.xpose.msra.mxu0 0.0
        %868 = vmatprep.subr.mxu0 0.0
        %869 = vmatpush1.xpose.msra.mxu0 0.0
        %870 = vmatprep.subr.mxu0 0.0
        %871 = vmatpush1.xpose.msra.mxu0 0.0
        %872 = vmatprep.subr.mxu0 0.0
        %873 = vmatpush1.xpose.msra.mxu0 0.0
        %874 = vmatprep.subr.mxu0 0.0
        %875 = vmatpush1.xpose.msra.mxu0 0.0
        %876 = vmatprep.subr.mxu0 0.0
        %877 = vmatpush1.xpose.msra.mxu0 0.0
        %878 = vmatprep.mubr.f32.mxu0 0.0
        %879 = vmatmul.mubr.f32.gmra.mrb[0].mxu0 %v810
        %v880 = vpop.f32.mrb[0].mxu0
        %v881 = vadd.f32 0.0, %v880
        %v882 = vpop.f32.mrb[0].mxu0
        %883 = vdwg.mxu0
        %v884 = vsel %vm644, %v881, -inf
        %885 = vmax.xlane.f32.xlu0 %v884
        %v886 = vpop.xlane.xlu0 %885
        %v887 = vsub.f32 %v881, %v886
        %v888 = vmul.f32 %v887, 1.442695
        %v889 = vpow.pop %v888
        %v890 = vsel %vm644, %v889, 0.0
        %891 = vadd.xlane.f32.xlu0 %v890
        %v892 = vpop.xlane.xlu0 %891
        %v893 = vrcp.pop %v892
        %v894 = vmul.f32 %v889, %v893
        %896 = vrot.lane.b32.xlu0 %v643, 120
        %v897 = vpop.permute.xlu0 %896
        %v900 = vsel %vm644, %v894, 0
        %902 = vmatprep.subr.mxu0 0.0
        %903 = vmatpush1.msra.mxu0 %v897
        %904 = vmatprep.subr.mxu0 0.0
        %905 = vmatpush1.msra.mxu0 0.0
        %906 = vmatprep.subr.mxu0 0.0
        %907 = vmatpush1.msra.mxu0 0.0
        %908 = vmatprep.subr.mxu0 0.0
        %909 = vmatpush1.msra.mxu0 0.0
        %910 = vmatprep.subr.mxu0 0.0
        %911 = vmatpush1.msra.mxu0 0.0
        %912 = vmatprep.subr.mxu0 0.0
        %913 = vmatpush1.msra.mxu0 0.0
        %914 = vmatprep.subr.mxu0 0.0
        %915 = vmatpush1.msra.mxu0 0.0
        %916 = vmatprep.subr.mxu0 0.0
        %917 = vmatpush1.msra.mxu0 0.0
        %918 = vmatprep.subr.mxu0 0.0
        %919 = vmatpush1.msra.mxu0 0.0
        %920 = vmatprep.subr.mxu0 0.0
        %921 = vmatpush1.msra.mxu0 0.0
        %922 = vmatprep.subr.mxu0 0.0
        %923 = vmatpush1.msra.mxu0 0.0
        %924 = vmatprep.subr.mxu0 0.0
        %925 = vmatpush1.msra.mxu0 0.0
        %926 = vmatprep.subr.mxu0 0.0
        %927 = vmatpush1.msra.mxu0 0.0
        %928 = vmatprep.subr.mxu0 0.0
        %929 = vmatpush1.msra.mxu0 0.0
        %930 = vmatprep.subr.mxu0 0.0
        %931 = vmatpush1.msra.mxu0 0.0
        %932 = vmatprep.subr.mxu0 0.0
        %933 = vmatpush1.msra.mxu0 0.0
        %934 = vmatprep.subr.mxu0 0.0
        %935 = vmatpush1.msra.mxu0 0.0
        %936 = vmatprep.subr.mxu0 0.0
        %937 = vmatpush1.msra.mxu0 0.0
        %938 = vmatprep.subr.mxu0 0.0
        %939 = vmatpush1.msra.mxu0 0.0
        %940 = vmatprep.subr.mxu0 0.0
        %941 = vmatpush1.msra.mxu0 0.0
        %942 = vmatprep.subr.mxu0 0.0
        %943 = vmatpush1.msra.mxu0 0.0
        %944 = vmatprep.subr.mxu0 0.0
        %945 = vmatpush1.msra.mxu0 0.0
        %946 = vmatprep.subr.mxu0 0.0
        %947 = vmatpush1.msra.mxu0 0.0
        %948 = vmatprep.subr.mxu0 0.0
        %949 = vmatpush1.msra.mxu0 0.0
        %950 = vmatprep.subr.mxu0 0.0
        %951 = vmatpush1.msra.mxu0 0.0
        %952 = vmatprep.subr.mxu0 0.0
        %953 = vmatpush1.msra.mxu0 0.0
        %954 = vmatprep.subr.mxu0 0.0
        %955 = vmatpush1.msra.mxu0 0.0
        %956 = vmatprep.subr.mxu0 0.0
        %957 = vmatpush1.msra.mxu0 0.0
        %958 = vmatprep.subr.mxu0 0.0
        %959 = vmatpush1.msra.mxu0 0.0
        %960 = vmatprep.subr.mxu0 0.0
        %961 = vmatpush1.msra.mxu0 0.0
        %962 = vmatprep.subr.mxu0 0.0
        %963 = vmatpush1.msra.mxu0 0.0
        %964 = vmatprep.subr.mxu0 0.0
        %965 = vmatpush1.msra.mxu0 0.0
        %966 = vmatprep.mubr.f32.mxu0 0.0
        %967 = vmatmul.mubr.f32.gmra.mrb[0].mxu0 %v900
        %v968 = vpop.f32.mrb[0].mxu0
        %v969 = vadd.f32 0.0, %v968
        %v970 = vpop.f32.mrb[0].mxu0
        %971 = vdwg.mxu0
        %973 = vrot.lane.b32.xlu0 %v969, 8
        %v974 = vpop.permute.xlu0 %973
        %vm976 = vcmask 130112
        %977 = vst.msk [vmem:[#allocation4] sm:$0xff] %vm976, %v974
        %978 = vrot.lane.b32.xlu0 %v641, 112
        %v979 = vpop.permute.xlu0 %978
        %980 = vrot.lane.b32.xlu0 %v642, 112
        %v981 = vpop.permute.xlu0 %980
        %v982 = vsel %vm644, %v979, 0
        %v984 = vsel %vm644, %v981, 0
        %986 = vmatprep.subr.mxu0 0.0
        %987 = vmatpush1.xpose.msra.mxu0 %v984
        %988 = vmatprep.subr.mxu0 0.0
        %989 = vmatpush1.xpose.msra.mxu0 0.0
        %990 = vmatprep.subr.mxu0 0.0
        %991 = vmatpush1.xpose.msra.mxu0 0.0
        %992 = vmatprep.subr.mxu0 0.0
        %993 = vmatpush1.xpose.msra.mxu0 0.0
        %994 = vmatprep.subr.mxu0 0.0
        %995 = vmatpush1.xpose.msra.mxu0 0.0
        %996 = vmatprep.subr.mxu0 0.0
        %997 = vmatpush1.xpose.msra.mxu0 0.0
        %998 = vmatprep.subr.mxu0 0.0
        %999 = vmatpush1.xpose.msra.mxu0 0.0
        %1000 = vmatprep.subr.mxu0 0.0
        %1001 = vmatpush1.xpose.msra.mxu0 0.0
        %1002 = vmatprep.subr.mxu0 0.0
        %1003 = vmatpush1.xpose.msra.mxu0 0.0
        %1004 = vmatprep.subr.mxu0 0.0
        %1005 = vmatpush1.xpose.msra.mxu0 0.0
        %1006 = vmatprep.subr.mxu0 0.0
        %1007 = vmatpush1.xpose.msra.mxu0 0.0
        %1008 = vmatprep.subr.mxu0 0.0
        %1009 = vmatpush1.xpose.msra.mxu0 0.0
        %1010 = vmatprep.subr.mxu0 0.0
        %1011 = vmatpush1.xpose.msra.mxu0 0.0
        %1012 = vmatprep.subr.mxu0 0.0
        %1013 = vmatpush1.xpose.msra.mxu0 0.0
        %1014 = vmatprep.subr.mxu0 0.0
        %1015 = vmatpush1.xpose.msra.mxu0 0.0
        %1016 = vmatprep.subr.mxu0 0.0
        %1017 = vmatpush1.xpose.msra.mxu0 0.0
        %1018 = vmatprep.subr.mxu0 0.0
        %1019 = vmatpush1.xpose.msra.mxu0 0.0
        %1020 = vmatprep.subr.mxu0 0.0
        %1021 = vmatpush1.xpose.msra.mxu0 0.0
        %1022 = vmatprep.subr.mxu0 0.0
        %1023 = vmatpush1.xpose.msra.mxu0 0.0
        %1024 = vmatprep.subr.mxu0 0.0
        %1025 = vmatpush1.xpose.msra.mxu0 0.0
        %1026 = vmatprep.subr.mxu0 0.0
        %1027 = vmatpush1.xpose.msra.mxu0 0.0
        %1028 = vmatprep.subr.mxu0 0.0
        %1029 = vmatpush1.xpose.msra.mxu0 0.0
        %1030 = vmatprep.subr.mxu0 0.0
        %1031 = vmatpush1.xpose.msra.mxu0 0.0
        %1032 = vmatprep.subr.mxu0 0.0
        %1033 = vmatpush1.xpose.msra.mxu0 0.0
        %1034 = vmatprep.subr.mxu0 0.0
        %1035 = vmatpush1.xpose.msra.mxu0 0.0
        %1036 = vmatprep.subr.mxu0 0.0
        %1037 = vmatpush1.xpose.msra.mxu0 0.0
        %1038 = vmatprep.subr.mxu0 0.0
        %1039 = vmatpush1.xpose.msra.mxu0 0.0
        %1040 = vmatprep.subr.mxu0 0.0
        %1041 = vmatpush1.xpose.msra.mxu0 0.0
        %1042 = vmatprep.subr.mxu0 0.0
        %1043 = vmatpush1.xpose.msra.mxu0 0.0
        %1044 = vmatprep.subr.mxu0 0.0
        %1045 = vmatpush1.xpose.msra.mxu0 0.0
        %1046 = vmatprep.subr.mxu0 0.0
        %1047 = vmatpush1.xpose.msra.mxu0 0.0
        %1048 = vmatprep.subr.mxu0 0.0
        %1049 = vmatpush1.xpose.msra.mxu0 0.0
        %1050 = vmatprep.mubr.f32.mxu0 0.0
        %1051 = vmatmul.mubr.f32.gmra.mrb[0].mxu0 %v982
        %v1052 = vpop.f32.mrb[0].mxu0
        %v1053 = vadd.f32 0.0, %v1052
        %v1054 = vpop.f32.mrb[0].mxu0
        %1055 = vdwg.mxu0
        %v1056 = vsel %vm644, %v1053, -inf
        %1057 = vmax.xlane.f32.xlu0 %v1056
        %v1058 = vpop.xlane.xlu0 %1057
        %v1059 = vsub.f32 %v1053, %v1058
        %v1060 = vmul.f32 %v1059, 1.442695
        %v1061 = vpow.pop %v1060
        %v1062 = vsel %vm644, %v1061, 0.0
        %1063 = vadd.xlane.f32.xlu0 %v1062
        %v1064 = vpop.xlane.xlu0 %1063
        %v1065 = vrcp.pop %v1064
        %v1066 = vmul.f32 %v1061, %v1065
        %1067 = vrot.lane.b32.xlu0 %v643, 112
        %v1068 = vpop.permute.xlu0 %1067
        %v1071 = vsel %vm644, %v1066, 0
        %1073 = vmatprep.subr.mxu0 0.0
        %1074 = vmatpush1.msra.mxu0 %v1068
        %1075 = vmatprep.subr.mxu0 0.0
        %1076 = vmatpush1.msra.mxu0 0.0
        %1077 = vmatprep.subr.mxu0 0.0
        %1078 = vmatpush1.msra.mxu0 0.0
        %1079 = vmatprep.subr.mxu0 0.0
        %1080 = vmatpush1.msra.mxu0 0.0
        %1081 = vmatprep.subr.mxu0 0.0
        %1082 = vmatpush1.msra.mxu0 0.0
        %1083 = vmatprep.subr.mxu0 0.0
        %1084 = vmatpush1.msra.mxu0 0.0
        %1085 = vmatprep.subr.mxu0 0.0
        %1086 = vmatpush1.msra.mxu0 0.0
        %1087 = vmatprep.subr.mxu0 0.0
        %1088 = vmatpush1.msra.mxu0 0.0
        %1089 = vmatprep.subr.mxu0 0.0
        %1090 = vmatpush1.msra.mxu0 0.0
        %1091 = vmatprep.subr.mxu0 0.0
        %1092 = vmatpush1.msra.mxu0 0.0
        %1093 = vmatprep.subr.mxu0 0.0
        %1094 = vmatpush1.msra.mxu0 0.0
        %1095 = vmatprep.subr.mxu0 0.0
        %1096 = vmatpush1.msra.mxu0 0.0
        %1097 = vmatprep.subr.mxu0 0.0
        %1098 = vmatpush1.msra.mxu0 0.0
        %1099 = vmatprep.subr.mxu0 0.0
        %1100 = vmatpush1.msra.mxu0 0.0
        %1101 = vmatprep.subr.mxu0 0.0
        %1102 = vmatpush1.msra.mxu0 0.0
        %1103 = vmatprep.subr.mxu0 0.0
        %1104 = vmatpush1.msra.mxu0 0.0
        %1105 = vmatprep.subr.mxu0 0.0
        %1106 = vmatpush1.msra.mxu0 0.0
        %1107 = vmatprep.subr.mxu0 0.0
        %1108 = vmatpush1.msra.mxu0 0.0
        %1109 = vmatprep.subr.mxu0 0.0
        %1110 = vmatpush1.msra.mxu0 0.0
        %1111 = vmatprep.subr.mxu0 0.0
        %1112 = vmatpush1.msra.mxu0 0.0
        %1113 = vmatprep.subr.mxu0 0.0
        %1114 = vmatpush1.msra.mxu0 0.0
        %1115 = vmatprep.subr.mxu0 0.0
        %1116 = vmatpush1.msra.mxu0 0.0
        %1117 = vmatprep.subr.mxu0 0.0
        %1118 = vmatpush1.msra.mxu0 0.0
        %1119 = vmatprep.subr.mxu0 0.0
        %1120 = vmatpush1.msra.mxu0 0.0
        %1121 = vmatprep.subr.mxu0 0.0
        %1122 = vmatpush1.msra.mxu0 0.0
        %1123 = vmatprep.subr.mxu0 0.0
        %1124 = vmatpush1.msra.mxu0 0.0
        %1125 = vmatprep.subr.mxu0 0.0
        %1126 = vmatpush1.msra.mxu0 0.0
        %1127 = vmatprep.subr.mxu0 0.0
        %1128 = vmatpush1.msra.mxu0 0.0
        %1129 = vmatprep.subr.mxu0 0.0
        %1130 = vmatpush1.msra.mxu0 0.0
        %1131 = vmatprep.subr.mxu0 0.0
        %1132 = vmatpush1.msra.mxu0 0.0
        %1133 = vmatprep.subr.mxu0 0.0
        %1134 = vmatpush1.msra.mxu0 0.0
        %1135 = vmatprep.subr.mxu0 0.0
        %1136 = vmatpush1.msra.mxu0 0.0
        %1137 = vmatprep.mubr.f32.mxu0 0.0
        %1138 = vmatmul.mubr.f32.gmra.mrb[0].mxu0 %v1071
        %v1139 = vpop.f32.mrb[0].mxu0
        %v1140 = vadd.f32 0.0, %v1139
        %v1141 = vpop.f32.mrb[0].mxu0
        %1142 = vdwg.mxu0
        %1144 = vrot.lane.b32.xlu0 %v1140, 16
        %v1145 = vpop.permute.xlu0 %1144
        %vm1147 = vcmask 195712
        %1148 = vst.msk [vmem:[#allocation4] sm:$0xff] %vm1147, %v1145
        %1149 = vrot.lane.b32.xlu0 %v641, 104
        %v1150 = vpop.permute.xlu0 %1149
        %1151 = vrot.lane.b32.xlu0 %v642, 104
        %v1152 = vpop.permute.xlu0 %1151
        %v1153 = vsel %vm644, %v1150, 0
        %v1155 = vsel %vm644, %v1152, 0
        %1157 = vmatprep.subr.mxu0 0.0
        %1158 = vmatpush1.xpose.msra.mxu0 %v1155
        %1159 = vmatprep.subr.mxu0 0.0
        %1160 = vmatpush1.xpose.msra.mxu0 0.0
        %1161 = vmatprep.subr.mxu0 0.0
        %1162 = vmatpush1.xpose.msra.mxu0 0.0
        %1163 = vmatprep.subr.mxu0 0.0
        %1164 = vmatpush1.xpose.msra.mxu0 0.0
        %1165 = vmatprep.subr.mxu0 0.0
        %1166 = vmatpush1.xpose.msra.mxu0 0.0
        %1167 = vmatprep.subr.mxu0 0.0
        %1168 = vmatpush1.xpose.msra.mxu0 0.0
        %1169 = vmatprep.subr.mxu0 0.0
        %1170 = vmatpush1.xpose.msra.mxu0 0.0
        %1171 = vmatprep.subr.mxu0 0.0
        %1172 = vmatpush1.xpose.msra.mxu0 0.0
        %1173 = vmatprep.subr.mxu0 0.0
        %1174 = vmatpush1.xpose.msra.mxu0 0.0
        %1175 = vmatprep.subr.mxu0 0.0
        %1176 = vmatpush1.xpose.msra.mxu0 0.0
        %1177 = vmatprep.subr.mxu0 0.0
        %1178 = vmatpush1.xpose.msra.mxu0 0.0
        %1179 = vmatprep.subr.mxu0 0.0
        %1180 = vmatpush1.xpose.msra.mxu0 0.0
        %1181 = vmatprep.subr.mxu0 0.0
        %1182 = vmatpush1.xpose.msra.mxu0 0.0
        %1183 = vmatprep.subr.mxu0 0.0
        %1184 = vmatpush1.xpose.msra.mxu0 0.0
        %1185 = vmatprep.subr.mxu0 0.0
        %1186 = vmatpush1.xpose.msra.mxu0 0.0
        %1187 = vmatprep.subr.mxu0 0.0
        %1188 = vmatpush1.xpose.msra.mxu0 0.0
        %1189 = vmatprep.subr.mxu0 0.0
        %1190 = vmatpush1.xpose.msra.mxu0 0.0
        %1191 = vmatprep.subr.mxu0 0.0
        %1192 = vmatpush1.xpose.msra.mxu0 0.0
        %1193 = vmatprep.subr.mxu0 0.0
        %1194 = vmatpush1.xpose.msra.mxu0 0.0
        %1195 = vmatprep.subr.mxu0 0.0
        %1196 = vmatpush1.xpose.msra.mxu0 0.0
        %1197 = vmatprep.subr.mxu0 0.0
        %1198 = vmatpush1.xpose.msra.mxu0 0.0
        %1199 = vmatprep.subr.mxu0 0.0
        %1200 = vmatpush1.xpose.msra.mxu0 0.0
        %1201 = vmatprep.subr.mxu0 0.0
        %1202 = vmatpush1.xpose.msra.mxu0 0.0
        %1203 = vmatprep.subr.mxu0 0.0
        %1204 = vmatpush1.xpose.msra.mxu0 0.0
        %1205 = vmatprep.subr.mxu0 0.0
        %1206 = vmatpush1.xpose.msra.mxu0 0.0
        %1207 = vmatprep.subr.mxu0 0.0
        %1208 = vmatpush1.xpose.msra.mxu0 0.0
        %1209 = vmatprep.subr.mxu0 0.0
        %1210 = vmatpush1.xpose.msra.mxu0 0.0
        %1211 = vmatprep.subr.mxu0 0.0
        %1212 = vmatpush1.xpose.msra.mxu0 0.0
        %1213 = vmatprep.subr.mxu0 0.0
        %1214 = vmatpush1.xpose.msra.mxu0 0.0
        %1215 = vmatprep.subr.mxu0 0.0
        %1216 = vmatpush1.xpose.msra.mxu0 0.0
        %1217 = vmatprep.subr.mxu0 0.0
        %1218 = vmatpush1.xpose.msra.mxu0 0.0
        %1219 = vmatprep.subr.mxu0 0.0
        %1220 = vmatpush1.xpose.msra.mxu0 0.0
        %1221 = vmatprep.mubr.f32.mxu0 0.0
        %1222 = vmatmul.mubr.f32.gmra.mrb[0].mxu0 %v1153
        %v1223 = vpop.f32.mrb[0].mxu0
        %v1224 = vadd.f32 0.0, %v1223
        %v1225 = vpop.f32.mrb[0].mxu0
        %1226 = vdwg.mxu0
        %v1227 = vsel %vm644, %v1224, -inf
        %1228 = vmax.xlane.f32.xlu0 %v1227
        %v1229 = vpop.xlane.xlu0 %1228
        %v1230 = vsub.f32 %v1224, %v1229
        %v1231 = vmul.f32 %v1230, 1.442695
        %v1232 = vpow.pop %v1231
        %v1233 = vsel %vm644, %v1232, 0.0
        %1234 = vadd.xlane.f32.xlu0 %v1233
        %v1235 = vpop.xlane.xlu0 %1234
        %v1236 = vrcp.pop %v1235
        %v1237 = vmul.f32 %v1232, %v1236
        %1238 = vrot.lane.b32.xlu0 %v643, 104
        %v1239 = vpop.permute.xlu0 %1238
        %v1242 = vsel %vm644, %v1237, 0
        %1244 = vmatprep.subr.mxu0 0.0
        %1245 = vmatpush1.msra.mxu0 %v1239
        %1246 = vmatprep.subr.mxu0 0.0
        %1247 = vmatpush1.msra.mxu0 0.0
        %1248 = vmatprep.subr.mxu0 0.0
        %1249 = vmatpush1.msra.mxu0 0.0
        %1250 = vmatprep.subr.mxu0 0.0
        %1251 = vmatpush1.msra.mxu0 0.0
        %1252 = vmatprep.subr.mxu0 0.0
        %1253 = vmatpush1.msra.mxu0 0.0
        %1254 = vmatprep.subr.mxu0 0.0
        %1255 = vmatpush1.msra.mxu0 0.0
        %1256 = vmatprep.subr.mxu0 0.0
        %1257 = vmatpush1.msra.mxu0 0.0
        %1258 = vmatprep.subr.mxu0 0.0
        %1259 = vmatpush1.msra.mxu0 0.0
        %1260 = vmatprep.subr.mxu0 0.0
        %1261 = vmatpush1.msra.mxu0 0.0
        %1262 = vmatprep.subr.mxu0 0.0
        %1263 = vmatpush1.msra.mxu0 0.0
        %1264 = vmatprep.subr.mxu0 0.0
        %1265 = vmatpush1.msra.mxu0 0.0
        %1266 = vmatprep.subr.mxu0 0.0
        %1267 = vmatpush1.msra.mxu0 0.0
        %1268 = vmatprep.subr.mxu0 0.0
        %1269 = vmatpush1.msra.mxu0 0.0
        %1270 = vmatprep.subr.mxu0 0.0
        %1271 = vmatpush1.msra.mxu0 0.0
        %1272 = vmatprep.subr.mxu0 0.0
        %1273 = vmatpush1.msra.mxu0 0.0
        %1274 = vmatprep.subr.mxu0 0.0
        %1275 = vmatpush1.msra.mxu0 0.0
        %1276 = vmatprep.subr.mxu0 0.0
        %1277 = vmatpush1.msra.mxu0 0.0
        %1278 = vmatprep.subr.mxu0 0.0
        %1279 = vmatpush1.msra.mxu0 0.0
        %1280 = vmatprep.subr.mxu0 0.0
        %1281 = vmatpush1.msra.mxu0 0.0
        %1282 = vmatprep.subr.mxu0 0.0
        %1283 = vmatpush1.msra.mxu0 0.0
        %1284 = vmatprep.subr.mxu0 0.0
        %1285 = vmatpush1.msra.mxu0 0.0
        %1286 = vmatprep.subr.mxu0 0.0
        %1287 = vmatpush1.msra.mxu0 0.0
        %1288 = vmatprep.subr.mxu0 0.0
        %1289 = vmatpush1.msra.mxu0 0.0
        %1290 = vmatprep.subr.mxu0 0.0
        %1291 = vmatpush1.msra.mxu0 0.0
        %1292 = vmatprep.subr.mxu0 0.0
        %1293 = vmatpush1.msra.mxu0 0.0
        %1294 = vmatprep.subr.mxu0 0.0
        %1295 = vmatpush1.msra.mxu0 0.0
        %1296 = vmatprep.subr.mxu0 0.0
        %1297 = vmatpush1.msra.mxu0 0.0
        %1298 = vmatprep.subr.mxu0 0.0
        %1299 = vmatpush1.msra.mxu0 0.0
        %1300 = vmatprep.subr.mxu0 0.0
        %1301 = vmatpush1.msra.mxu0 0.0
        %1302 = vmatprep.subr.mxu0 0.0
        %1303 = vmatpush1.msra.mxu0 0.0
        %1304 = vmatprep.subr.mxu0 0.0
        %1305 = vmatpush1.msra.mxu0 0.0
        %1306 = vmatprep.subr.mxu0 0.0
        %1307 = vmatpush1.msra.mxu0 0.0
        %1308 = vmatprep.mubr.f32.mxu0 0.0
        %1309 = vmatmul.mubr.f32.gmra.mrb[0].mxu0 %v1242
        %v1310 = vpop.f32.mrb[0].mxu0
        %v1311 = vadd.f32 0.0, %v1310
        %v1312 = vpop.f32.mrb[0].mxu0
        %1313 = vdwg.mxu0
        %1315 = vrot.lane.b32.xlu0 %v1311, 24
        %v1316 = vpop.permute.xlu0 %1315
        %vm1318 = vcmask 261312
        %1319 = vst.msk [vmem:[#allocation4] sm:$0xff] %vm1318, %v1316
        %v1320 = vld [vmem:[#allocation4] sm:$0xff]
        %1321 = vst.msk [vmem:[%s398] sm:$0xff] %vm567, %v1320
        %s1322 = sand.u32 %s193, 1
        %s1323 = scalar_lea.sflag [#allocation7], %s1322
        %s1324 = sand.u32 %s193, 1
        %s1325 = smul.addr %s1324, 8
        %s1326 = scalar_lea.vmem [#allocation16], %s1325
        // Predicated region
        $region73: #{tpu_custom_call.1} parent=43 // pred_check
          %p1327 = pneg %p203
        $region74: #{tpu_custom_call.1} parent=43 // pred_check_branch
          %1329 = sbr.rel (%p1327) target = $region76
        $region75: #{tpu_custom_call.1} parent=43 // pred_region
          %s1331 = ssub.s32 128, 128
          %1332 = vsyncadd %s1323, %s1331
          %s1333 = sadd.s32 %s33, %s32
          %s1334 = smul.addr %s1333, 128
          %s1335 = scalar_lea.hbm %s6, %s1334
          %s1337 = sshll.u32 %s1326, 4
          %s1338 = int_to_ptr.vmem [resolvable:$true] %s1337
          %1340 = dma.vmem_to_hbm [thread:$0]  %s1338, 128, %s1335, %s1323
        $region76: #{tpu_custom_call.1} parent=43 // pred_fallthru
          _
      $region44: #{tpu_custom_call.1} parent=5 // pred_fallthru
        _
      %p1341 = scmp.le.s32.totalorder 2, %s23
      // Predicated region
      $region77: #{tpu_custom_call.1} parent=5 // pred_check
        %p1342 = pneg %p1341
      $region78: #{tpu_custom_call.1} parent=5 // pred_check_branch
        %1344 = sbr.rel (%p1342) target = $region80
      $region79: #{tpu_custom_call.1} parent=5 // pred_region
        %s1345 = ssub.s32 %s23, 2
        // Predicated region
        $region81: #{tpu_custom_call.1} parent=79 // pred_check
          %p1346 = pneg %p209
        $region82: #{tpu_custom_call.1} parent=79 // pred_check_branch
          %1348 = sbr.rel (%p1346) target = $region84
        $region83: #{tpu_custom_call.1} parent=79 // pred_region
          %s1349 = sand.u32 %s194, 1
          %s1350 = scalar_lea.sflag [#allocation7], %s1349
          %s1351 = sand.u32 %s194, 1
          %s1352 = smul.addr %s1351, 8
          %s1353 = scalar_lea.vmem [#allocation16], %s1352
          %1354 = dma.done %s1350, 128
        $region84: #{tpu_custom_call.1} parent=79 // pred_fallthru
          _
      $region80: #{tpu_custom_call.1} parent=5 // pred_fallthru
        _
    $region6: #{tpu_custom_call.1} parent=1 // loop_footer
      %s27 = sadd.s32 1, %s23
    $region7: #{tpu_custom_call.1} parent=1 // loop_footer_branch
      %22 = sbr.rel target = $region3
    $region8: #{tpu_custom_call.1} parent=1 // loop_exit
      _
    %1355 = vsyncpa [#allocation6], 1
    %s1356 = scalar_lea.sflag [#allocation6], 1
    %1357 = vsyncpa %s1356, 1
    %1358 = vsyncpa [#allocation9], 1
    %s1359 = scalar_lea.sflag [#allocation9], 1
    %1360 = vsyncpa %s1359, 1
    %1361 = vsyncpa [#allocation12], 1
    %1362 = vsyncpa [#allocation15], 1
    %1363 = vsyncpa [#allocation7], 1
    %s1364 = scalar_lea.sflag [#allocation7], 1
    %1365 = vsyncpa %s1364, 1

</llo_original>
